<compile_context>
chip_gen: v6e
topology: v6e:2x2x1
jax: 0.10.0
libtpu: 0.0.40
codegen_flags: <defaults>
</compile_context>

<pallas_src>
import functools

import jax
import jax.numpy as jnp
from jax.experimental import pallas as pl
from jax.experimental.pallas import tpu as pltpu

# MLP dims from DecoderNet.__init__
DIMS = [10, 128, 256, 512, 256, 128, 784]

# Lane-friendly padded dims (host-side padding, sliced back after the kernel).
IN_PAD = 128             # 10  -> 128  (clean K for layer 1)
OUT_PAD = 896            # 784 -> 896 = 7 * 128 (lane-dense, unmasked output vst)
PADDED_DIMS = [IN_PAD] + DIMS[1:-1] + [OUT_PAD]


def decoder_mlp_kernel(x_ref,
                       w1, b1, w2, b2, w3, b3, w4, b4, w5, b5, w6, b6,
                       o_ref):
    """Fused forward pass of the 6-layer MLP for one batch tile.

    x_ref: (bt, IN_PAD) bf16.  w*: bf16 (in, out).  b*: f32 (1, out).
    o_ref: (bt, OUT_PAD) f32.
    """
    h = x_ref[...]                                    # bf16

    def linear(h_bf16, w_ref, b_ref, relu):
        # bf16 x bf16 -> f32 accumulation on the MXU.
        y = jnp.dot(h_bf16, w_ref[...], preferred_element_type=jnp.float32)
        y = y + b_ref[...]                            # f32 bias add (VPU)
        if relu:
            y = jnp.maximum(y, 0.0)
        return y

    h = linear(h, w1, b1, True).astype(jnp.bfloat16)
    h = linear(h, w2, b2, True).astype(jnp.bfloat16)
    h = linear(h, w3, b3, True).astype(jnp.bfloat16)
    h = linear(h, w4, b4, True).astype(jnp.bfloat16)
    h = linear(h, w5, b5, True).astype(jnp.bfloat16)
    y = linear(h, w6, b6, False)                      # final layer: no ReLU
    o_ref[...] = y.astype(o_ref.dtype)


def prepare_params(params):
    """Zero-pad layer-0 K (10->128) and layer-5 N (784->896), cast weights to
    bf16.  Biases stay f32 for the f32 bias-add path.  Done once, host-side."""
    prepared = []
    for idx, (w, b) in enumerate(params):
        fi, fo = PADDED_DIMS[idx], PADDED_DIMS[idx + 1]
        w_p = jnp.zeros((fi, fo), jnp.float32).at[:w.shape[0], :w.shape[1]].set(w)
        b_p = jnp.zeros((1, fo), jnp.float32).at[:, :b.shape[1]].set(b)
        prepared.append((w_p.astype(jnp.bfloat16), b_p))
    return prepared


def _round_up(n, m):
    return ((n + m - 1) // m) * m


@functools.partial(jax.jit, static_argnames=("batch_tile",))
def decoder_net_forward(x, prepared_params, *, batch_tile=256):
    """x: (B, 10) f32; prepared_params: output of prepare_params().

    Returns (B, 784) f32.
    """
    B, in_dim = x.shape
    assert in_dim == DIMS[0]

    # Adapt the tile to the batch: keep sublane (8) alignment, never pad a
    # tiny batch all the way up to a 256-row tile.
    bt = max(8, min(batch_tile, _round_up(B, 8)))
    num_tiles = pl.cdiv(B, bt)
    B_pad = num_tiles * bt

    # Host-side padding: batch rows up to a tile multiple, K up to 128; bf16 in.
    x_p = jnp.pad(x, ((0, B_pad - B), (0, IN_PAD - in_dim))).astype(jnp.bfloat16)

    flat = []
    in_specs = [pl.BlockSpec((bt, IN_PAD), lambda i: (i, 0))]
    for (w, b) in prepared_params:
        flat.extend([w, b])
        # Grid-invariant operands (constant index_map): fetch once, single-buffer.
        in_specs.append(pl.BlockSpec(w.shape, lambda i: (0, 0),
                                     pipeline_mode=pl.Buffered(1)))
        in_specs.append(pl.BlockSpec(b.shape, lambda i: (0, 0),
                                     pipeline_mode=pl.Buffered(1)))

    out = pl.pallas_call(
        decoder_mlp_kernel,
        out_shape=jax.ShapeDtypeStruct((B_pad, OUT_PAD), jnp.float32),
        grid=(num_tiles,),
        in_specs=in_specs,
        out_specs=pl.BlockSpec((bt, OUT_PAD), lambda i: (i, 0)),
        compiler_params=pltpu.CompilerParams(
            dimension_semantics=("parallel",),
        ),
    )(x_p, *flat)

    # Slice off batch and feature padding.
    return out[:B, :DIMS[-1]]


def init_params(key):
    """Deterministic init mimicking PyTorch Linear default (uniform +/- 1/sqrt(fan_in)),
    stored pre-transposed as (in, out) f32."""
    params = []
    for idx in range(len(DIMS) - 1):
        fan_in, fan_out = DIMS[idx], DIMS[idx + 1]
        key, kw, kb = jax.random.split(key, 3)
        bound = 1.0 / jnp.sqrt(jnp.float32(fan_in))
        w = jax.random.uniform(kw, (fan_in, fan_out), jnp.float32, -bound, bound)
        b = jax.random.uniform(kb, (1, fan_out), jnp.float32, -bound, bound)
        params.append((w, b))
    return params


def reference_forward(x, params):
    """Pure-JAX f32 reference matching the PyTorch module."""
    h = x
    for i, (w, b) in enumerate(params):
        h = h @ w + b
        if i < len(params) - 1:
            h = jnp.maximum(h, 0.0)
    return h


if __name__ == "__main__":
    key = jax.random.PRNGKey(0)
    key, kx = jax.random.split(key)

    B = 8  # small batch for the smoke test (one 8-row tile; no wasteful padding)
    x = jax.random.normal(kx, (B, DIMS[0]), jnp.float32)
    params = init_params(key)
    dev_params = prepare_params(params)

    out = decoder_net_forward(x, dev_params, batch_tile=256)
    out = jax.block_until_ready(out)

    ref = reference_forward(x, params)
    assert out.shape == (B, DIMS[-1]), out.shape
    # bf16 MXU operands with f32 accumulation: loosen tolerance vs the f32 reference.
    assert jnp.allclose(out, ref, atol=5e-2, rtol=5e-2), "mismatch vs reference"

    print("KERNEL_OK")
</pallas_src>

<mosaic_0001>
module attributes {stable_mosaic.version = 11 : i64} {
  func.func @decoder_mlp_kernel(%arg0: i32, %arg1: memref<8x128xbf16, #tpu.memory_space<vmem>>, %arg2: memref<128x128xbf16, #tpu.memory_space<vmem>>, %arg3: memref<1x128xf32, #tpu.memory_space<vmem>>, %arg4: memref<128x256xbf16, #tpu.memory_space<vmem>>, %arg5: memref<1x256xf32, #tpu.memory_space<vmem>>, %arg6: memref<256x512xbf16, #tpu.memory_space<vmem>>, %arg7: memref<1x512xf32, #tpu.memory_space<vmem>>, %arg8: memref<512x256xbf16, #tpu.memory_space<vmem>>, %arg9: memref<1x256xf32, #tpu.memory_space<vmem>>, %arg10: memref<256x128xbf16, #tpu.memory_space<vmem>>, %arg11: memref<1x128xf32, #tpu.memory_space<vmem>>, %arg12: memref<128x896xbf16, #tpu.memory_space<vmem>>, %arg13: memref<1x896xf32, #tpu.memory_space<vmem>>, %arg14: memref<8x896xf32, #tpu.memory_space<vmem>>) attributes {dimension_semantics = [#tpu.dimension_semantics<parallel>], iteration_bounds = array<i64: 1>, scalar_prefetch = 0 : i64, scratch_operands = 0 : i64, tpu.core_type = #tpu.core_type<tc>, window_params = [{transform_indices = @transform_0, window_bounds = array<i64: 8, 128>}, {pipeline_mode = #tpu.pipeline_mode<synchronous>, transform_indices = @transform_1, window_bounds = array<i64: 128, 128>}, {pipeline_mode = #tpu.pipeline_mode<synchronous>, transform_indices = @transform_2, window_bounds = array<i64: 1, 128>}, {pipeline_mode = #tpu.pipeline_mode<synchronous>, transform_indices = @transform_3, window_bounds = array<i64: 128, 256>}, {pipeline_mode = #tpu.pipeline_mode<synchronous>, transform_indices = @transform_4, window_bounds = array<i64: 1, 256>}, {pipeline_mode = #tpu.pipeline_mode<synchronous>, transform_indices = @transform_5, window_bounds = array<i64: 256, 512>}, {pipeline_mode = #tpu.pipeline_mode<synchronous>, transform_indices = @transform_6, window_bounds = array<i64: 1, 512>}, {pipeline_mode = #tpu.pipeline_mode<synchronous>, transform_indices = @transform_7, window_bounds = array<i64: 512, 256>}, {pipeline_mode = #tpu.pipeline_mode<synchronous>, transform_indices = @transform_8, window_bounds = array<i64: 1, 256>}, {pipeline_mode = #tpu.pipeline_mode<synchronous>, transform_indices = @transform_9, window_bounds = array<i64: 256, 128>}, {pipeline_mode = #tpu.pipeline_mode<synchronous>, transform_indices = @transform_10, window_bounds = array<i64: 1, 128>}, {pipeline_mode = #tpu.pipeline_mode<synchronous>, transform_indices = @transform_11, window_bounds = array<i64: 128, 896>}, {pipeline_mode = #tpu.pipeline_mode<synchronous>, transform_indices = @transform_12, window_bounds = array<i64: 1, 896>}, {transform_indices = @transform_13, window_bounds = array<i64: 8, 896>}]} {
    %c0 = arith.constant 0 : index
    %c0_0 = arith.constant 0 : index
    %0 = vector.load %arg1[%c0, %c0_0] : memref<8x128xbf16, #tpu.memory_space<vmem>>, vector<8x128xbf16>
    %c0_1 = arith.constant 0 : index
    %c0_2 = arith.constant 0 : index
    %1 = vector.load %arg2[%c0_1, %c0_2] : memref<128x128xbf16, #tpu.memory_space<vmem>>, vector<128x128xbf16>
    %cst = arith.constant dense<0.000000e+00> : vector<8x128xf32>
    %2 = tpu.matmul %0, %1, %cst {dimension_numbers = #tpu.dot_dimension_numbers<[1], [0], [0], [1], [0, 0, 1, 1], [], []>} : vector<8x128xbf16>, vector<128x128xbf16>, vector<8x128xf32> -> vector<8x128xf32>
    %c0_3 = arith.constant 0 : index
    %c0_4 = arith.constant 0 : index
    %3 = vector.load %arg3[%c0_3, %c0_4] : memref<1x128xf32, #tpu.memory_space<vmem>>, vector<1x128xf32>
    %4 = vector.broadcast %3 : vector<1x128xf32> to vector<8x128xf32>
    %5 = arith.addf %2, %4 : vector<8x128xf32>
    %cst_5 = arith.constant 0.000000e+00 : f32
    %6 = vector.broadcast %cst_5 : f32 to vector<8x128xf32>
    %7 = arith.maximumf %5, %6 : vector<8x128xf32>
    %8 = arith.truncf %7 : vector<8x128xf32> to vector<8x128xbf16>
    %c0_6 = arith.constant 0 : index
    %c0_7 = arith.constant 0 : index
    %9 = vector.load %arg4[%c0_6, %c0_7] : memref<128x256xbf16, #tpu.memory_space<vmem>>, vector<128x256xbf16>
    %cst_8 = arith.constant dense<0.000000e+00> : vector<8x256xf32>
    %10 = tpu.matmul %8, %9, %cst_8 {dimension_numbers = #tpu.dot_dimension_numbers<[1], [0], [0], [1], [0, 0, 1, 1], [], []>} : vector<8x128xbf16>, vector<128x256xbf16>, vector<8x256xf32> -> vector<8x256xf32>
    %c0_9 = arith.constant 0 : index
    %c0_10 = arith.constant 0 : index
    %11 = vector.load %arg5[%c0_9, %c0_10] : memref<1x256xf32, #tpu.memory_space<vmem>>, vector<1x256xf32>
    %12 = vector.broadcast %11 : vector<1x256xf32> to vector<8x256xf32>
    %13 = arith.addf %10, %12 : vector<8x256xf32>
    %cst_11 = arith.constant 0.000000e+00 : f32
    %14 = vector.broadcast %cst_11 : f32 to vector<8x256xf32>
    %15 = arith.maximumf %13, %14 : vector<8x256xf32>
    %16 = arith.truncf %15 : vector<8x256xf32> to vector<8x256xbf16>
    %c0_12 = arith.constant 0 : index
    %c0_13 = arith.constant 0 : index
    %17 = vector.load %arg6[%c0_12, %c0_13] : memref<256x512xbf16, #tpu.memory_space<vmem>>, vector<256x512xbf16>
    %cst_14 = arith.constant dense<0.000000e+00> : vector<8x512xf32>
    %18 = tpu.matmul %16, %17, %cst_14 {dimension_numbers = #tpu.dot_dimension_numbers<[1], [0], [0], [1], [0, 0, 1, 1], [], []>} : vector<8x256xbf16>, vector<256x512xbf16>, vector<8x512xf32> -> vector<8x512xf32>
    %c0_15 = arith.constant 0 : index
    %c0_16 = arith.constant 0 : index
    %19 = vector.load %arg7[%c0_15, %c0_16] : memref<1x512xf32, #tpu.memory_space<vmem>>, vector<1x512xf32>
    %20 = vector.broadcast %19 : vector<1x512xf32> to vector<8x512xf32>
    %21 = arith.addf %18, %20 : vector<8x512xf32>
    %cst_17 = arith.constant 0.000000e+00 : f32
    %22 = vector.broadcast %cst_17 : f32 to vector<8x512xf32>
    %23 = arith.maximumf %21, %22 : vector<8x512xf32>
    %24 = arith.truncf %23 : vector<8x512xf32> to vector<8x512xbf16>
    %c0_18 = arith.constant 0 : index
    %c0_19 = arith.constant 0 : index
    %25 = vector.load %arg8[%c0_18, %c0_19] : memref<512x256xbf16, #tpu.memory_space<vmem>>, vector<512x256xbf16>
    %cst_20 = arith.constant dense<0.000000e+00> : vector<8x256xf32>
    %26 = tpu.matmul %24, %25, %cst_20 {dimension_numbers = #tpu.dot_dimension_numbers<[1], [0], [0], [1], [0, 0, 1, 1], [], []>} : vector<8x512xbf16>, vector<512x256xbf16>, vector<8x256xf32> -> vector<8x256xf32>
    %c0_21 = arith.constant 0 : index
    %c0_22 = arith.constant 0 : index
    %27 = vector.load %arg9[%c0_21, %c0_22] : memref<1x256xf32, #tpu.memory_space<vmem>>, vector<1x256xf32>
    %28 = vector.broadcast %27 : vector<1x256xf32> to vector<8x256xf32>
    %29 = arith.addf %26, %28 : vector<8x256xf32>
    %cst_23 = arith.constant 0.000000e+00 : f32
    %30 = vector.broadcast %cst_23 : f32 to vector<8x256xf32>
    %31 = arith.maximumf %29, %30 : vector<8x256xf32>
    %32 = arith.truncf %31 : vector<8x256xf32> to vector<8x256xbf16>
    %c0_24 = arith.constant 0 : index
    %c0_25 = arith.constant 0 : index
    %33 = vector.load %arg10[%c0_24, %c0_25] : memref<256x128xbf16, #tpu.memory_space<vmem>>, vector<256x128xbf16>
    %cst_26 = arith.constant dense<0.000000e+00> : vector<8x128xf32>
    %34 = tpu.matmul %32, %33, %cst_26 {dimension_numbers = #tpu.dot_dimension_numbers<[1], [0], [0], [1], [0, 0, 1, 1], [], []>} : vector<8x256xbf16>, vector<256x128xbf16>, vector<8x128xf32> -> vector<8x128xf32>
    %c0_27 = arith.constant 0 : index
    %c0_28 = arith.constant 0 : index
    %35 = vector.load %arg11[%c0_27, %c0_28] : memref<1x128xf32, #tpu.memory_space<vmem>>, vector<1x128xf32>
    %36 = vector.broadcast %35 : vector<1x128xf32> to vector<8x128xf32>
    %37 = arith.addf %34, %36 : vector<8x128xf32>
    %cst_29 = arith.constant 0.000000e+00 : f32
    %38 = vector.broadcast %cst_29 : f32 to vector<8x128xf32>
    %39 = arith.maximumf %37, %38 : vector<8x128xf32>
    %40 = arith.truncf %39 : vector<8x128xf32> to vector<8x128xbf16>
    %c0_30 = arith.constant 0 : index
    %c0_31 = arith.constant 0 : index
    %41 = vector.load %arg12[%c0_30, %c0_31] : memref<128x896xbf16, #tpu.memory_space<vmem>>, vector<128x896xbf16>
    %cst_32 = arith.constant dense<0.000000e+00> : vector<8x896xf32>
    %42 = tpu.matmul %40, %41, %cst_32 {dimension_numbers = #tpu.dot_dimension_numbers<[1], [0], [0], [1], [0, 0, 1, 1], [], []>} : vector<8x128xbf16>, vector<128x896xbf16>, vector<8x896xf32> -> vector<8x896xf32>
    %c0_33 = arith.constant 0 : index
    %c0_34 = arith.constant 0 : index
    %43 = vector.load %arg13[%c0_33, %c0_34] : memref<1x896xf32, #tpu.memory_space<vmem>>, vector<1x896xf32>
    %44 = vector.broadcast %43 : vector<1x896xf32> to vector<8x896xf32>
    %45 = arith.addf %42, %44 : vector<8x896xf32>
    %c0_35 = arith.constant 0 : index
    %c0_36 = arith.constant 0 : index
    %46 = vector.load %arg14[%c0_35, %c0_36] : memref<8x896xf32, #tpu.memory_space<vmem>>, vector<8x896xf32>
    tpu.vector_store %arg14[%c0_35, %c0_36], %45 {strides = array<i32>} : memref<8x896xf32, #tpu.memory_space<vmem>>, vector<8x896xf32>,
    return
  }
  func.func @transform_0(%arg0: i32) -> (i32, i32) {
    %c0_i32 = arith.constant 0 : i32
    %c0_i32_0 = arith.constant 0 : i32
    return %arg0, %c0_i32 : i32, i32
  }
  func.func @transform_1(%arg0: i32) -> (i32, i32) {
    %c0_i32 = arith.constant 0 : i32
    %c0_i32_0 = arith.constant 0 : i32
    %c0_i32_1 = arith.constant 0 : i32
    return %c0_i32, %c0_i32_0 : i32, i32
  }
  func.func @transform_2(%arg0: i32) -> (i32, i32) {
    %c0_i32 = arith.constant 0 : i32
    %c0_i32_0 = arith.constant 0 : i32
    %c0_i32_1 = arith.constant 0 : i32
    return %c0_i32, %c0_i32_0 : i32, i32
  }
  func.func @transform_3(%arg0: i32) -> (i32, i32) {
    %c0_i32 = arith.constant 0 : i32
    %c0_i32_0 = arith.constant 0 : i32
    %c0_i32_1 = arith.constant 0 : i32
    return %c0_i32, %c0_i32_0 : i32, i32
  }
  func.func @transform_4(%arg0: i32) -> (i32, i32) {
    %c0_i32 = arith.constant 0 : i32
    %c0_i32_0 = arith.constant 0 : i32
    %c0_i32_1 = arith.constant 0 : i32
    return %c0_i32, %c0_i32_0 : i32, i32
  }
  func.func @transform_5(%arg0: i32) -> (i32, i32) {
    %c0_i32 = arith.constant 0 : i32
    %c0_i32_0 = arith.constant 0 : i32
    %c0_i32_1 = arith.constant 0 : i32
    return %c0_i32, %c0_i32_0 : i32, i32
  }
  func.func @transform_6(%arg0: i32) -> (i32, i32) {
    %c0_i32 = arith.constant 0 : i32
    %c0_i32_0 = arith.constant 0 : i32
    %c0_i32_1 = arith.constant 0 : i32
    return %c0_i32, %c0_i32_0 : i32, i32
  }
  func.func @transform_7(%arg0: i32) -> (i32, i32) {
    %c0_i32 = arith.constant 0 : i32
    %c0_i32_0 = arith.constant 0 : i32
    %c0_i32_1 = arith.constant 0 : i32
    return %c0_i32, %c0_i32_0 : i32, i32
  }
  func.func @transform_8(%arg0: i32) -> (i32, i32) {
    %c0_i32 = arith.constant 0 : i32
    %c0_i32_0 = arith.constant 0 : i32
    %c0_i32_1 = arith.constant 0 : i32
    return %c0_i32, %c0_i32_0 : i32, i32
  }
  func.func @transform_9(%arg0: i32) -> (i32, i32) {
    %c0_i32 = arith.constant 0 : i32
    %c0_i32_0 = arith.constant 0 : i32
    %c0_i32_1 = arith.constant 0 : i32
    return %c0_i32, %c0_i32_0 : i32, i32
  }
  func.func @transform_10(%arg0: i32) -> (i32, i32) {
    %c0_i32 = arith.constant 0 : i32
    %c0_i32_0 = arith.constant 0 : i32
    %c0_i32_1 = arith.constant 0 : i32
    return %c0_i32, %c0_i32_0 : i32, i32
  }
  func.func @transform_11(%arg0: i32) -> (i32, i32) {
    %c0_i32 = arith.constant 0 : i32
    %c0_i32_0 = arith.constant 0 : i32
    %c0_i32_1 = arith.constant 0 : i32
    return %c0_i32, %c0_i32_0 : i32, i32
  }
  func.func @transform_12(%arg0: i32) -> (i32, i32) {
    %c0_i32 = arith.constant 0 : i32
    %c0_i32_0 = arith.constant 0 : i32
    %c0_i32_1 = arith.constant 0 : i32
    return %c0_i32, %c0_i32_0 : i32, i32
  }
  func.func @transform_13(%arg0: i32) -> (i32, i32) {
    %c0_i32 = arith.constant 0 : i32
    %c0_i32_0 = arith.constant 0 : i32
    return %arg0, %c0_i32 : i32, i32
  }
}

</mosaic_0001>

<llo_original>
// kernel: decoder_net_forward.1
$region0: #{decoder_net_forward.1}
  #allocation0 [shape = 'u32[]', space=smem, size = 0x4, offset = 0x4, fixed_abs, tag = 'smem constant byte address 0x4 - core index']
  #allocation1 [shape = 'u32[144,128]{1,0:T(1,128)}', space=vmem, size = 0x12000, scoped, tag = 'internal scratch']
  %s0 = inlined_call_operand.vmem [shape: bf16[8,128], index: 0, kind: input, shape index: {}]
  %s1 = inlined_call_operand.hbm [shape: bf16[128,128], index: 1, kind: input, shape index: {}]
  %s2 = inlined_call_operand.vmem [shape: f32[1,128], index: 2, kind: input, shape index: {}]
  %s3 = inlined_call_operand.hbm [shape: bf16[128,256], index: 3, kind: input, shape index: {}]
  %s4 = inlined_call_operand.vmem [shape: f32[1,256], index: 4, kind: input, shape index: {}]
  %s5 = inlined_call_operand.hbm [shape: bf16[256,512], index: 5, kind: input, shape index: {}]
  %s6 = inlined_call_operand.vmem [shape: f32[1,512], index: 6, kind: input, shape index: {}]
  %s7 = inlined_call_operand.hbm [shape: bf16[512,256], index: 7, kind: input, shape index: {}]
  %s8 = inlined_call_operand.vmem [shape: f32[1,256], index: 8, kind: input, shape index: {}]
  %s9 = inlined_call_operand.hbm [shape: bf16[256,128], index: 9, kind: input, shape index: {}]
  %s10 = inlined_call_operand.vmem [shape: f32[1,128], index: 10, kind: input, shape index: {}]
  %s11 = inlined_call_operand.hbm [shape: bf16[128,896], index: 11, kind: input, shape index: {}]
  %s12 = inlined_call_operand.vmem [shape: f32[1,896], index: 12, kind: input, shape index: {}]
  %s13 = inlined_call_operand.hbm [shape: f32[8,896], index: 13, kind: output, shape index: {}]
  %s14 = sld [smem:[#allocation0]]
  $region86: #{decoder_net_forward.1} parent=0
    _
  %s16 = ssub.s32 1, %s14
  %s17 = scalar_select 0, %s16, %s14
  $region1: #{decoder_net_forward.1} parent=0
    #allocation2 [shape = 'u8[32768]{0}', space=vmem, size = 0x8000, scoped, tag = 'input window, operand 1, single buffered']
    #allocation3 [shape = 's32[1]{0}', space=sflag, size = 0x4, scoped, tag = 'scoped memory for decoder_net_forward.1']
    #allocation4 [shape = 's32[1]{0}', space=sflag, size = 0x4, scoped, tag = 'scoped memory for decoder_net_forward.1']
    #allocation5 [shape = 'u8[65536]{0}', space=vmem, size = 0x10000, scoped, tag = 'input window, operand 3, single buffered']
    #allocation6 [shape = 's32[1]{0}', space=sflag, size = 0x4, scoped, tag = 'scoped memory for decoder_net_forward.1']
    #allocation7 [shape = 'u8[262144]{0}', space=vmem, size = 0x40000, scoped, tag = 'input window, operand 5, single buffered']
    #allocation8 [shape = 'u8[262144]{0}', space=vmem, size = 0x40000, scoped, tag = 'input window, operand 7, single buffered']
    #allocation9 [shape = 's32[1]{0}', space=sflag, size = 0x4, scoped, tag = 'scoped memory for decoder_net_forward.1']
    #allocation10 [shape = 'u8[65536]{0}', space=vmem, size = 0x10000, scoped, tag = 'input window, operand 9, single buffered']
    #allocation11 [shape = 'u8[229376]{0}', space=vmem, size = 0x38000, scoped, tag = 'input window, operand 11, single buffered']
    #allocation12 [shape = 's32[1]{0}', space=sflag, size = 0x4, scoped, tag = 'scoped memory for decoder_net_forward.1']
    #allocation13 [shape = 'u8[28672]{0}', space=vmem, size = 0x7000, scoped, tag = 'output window, operand 0, single buffered']
    %18 = vsyncpa [#allocation3], 0
    %19 = vsyncpa [#allocation6], 0
    %20 = vsyncpa [#allocation9], 0
    %21 = vsyncpa [#allocation12], 0
    %22 = vsyncpa [#allocation4], 0
    // Predicated region
    $region2: #{decoder_net_forward.1} parent=1 // pred_check
      _
    $region3: #{decoder_net_forward.1} parent=1 // pred_check_branch
      %24 = sbr.rel (0) target = $region5
    $region4: #{decoder_net_forward.1} parent=1 // pred_region
      _
    $region5: #{decoder_net_forward.1} parent=1 // pred_fallthru
      _
    // Predicated region
    $region6: #{decoder_net_forward.1} parent=1 // pred_check
      _
    $region7: #{decoder_net_forward.1} parent=1 // pred_check_branch
      %26 = sbr.rel (0) target = $region9
    $region8: #{decoder_net_forward.1} parent=1 // pred_region
      %s28 = ssub.s32 1024, 1024
      %29 = vsyncadd [#allocation3], %s28
      %s30 = sshll.u32 [#allocation2], 4
      %s31 = int_to_ptr.vmem [resolvable:$true] %s30
      %36 = dma.hbm_to_vmem [thread:$0]  %s1, 1024, %s31, [#allocation3], 64, 64, 4
    $region9: #{decoder_net_forward.1} parent=1 // pred_fallthru
      _
    // Predicated region
    $region10: #{decoder_net_forward.1} parent=1 // pred_check
      _
    $region11: #{decoder_net_forward.1} parent=1 // pred_check_branch
      %38 = sbr.rel (0) target = $region13
    $region12: #{decoder_net_forward.1} parent=1 // pred_region
      _
    $region13: #{decoder_net_forward.1} parent=1 // pred_fallthru
      _
    // Predicated region
    $region14: #{decoder_net_forward.1} parent=1 // pred_check
      _
    $region15: #{decoder_net_forward.1} parent=1 // pred_check_branch
      %40 = sbr.rel (0) target = $region17
    $region16: #{decoder_net_forward.1} parent=1 // pred_region
      %s42 = ssub.s32 2048, 2048
      %43 = vsyncadd [#allocation6], %s42
      %s44 = sshll.u32 [#allocation5], 4
      %s45 = int_to_ptr.vmem [resolvable:$true] %s44
      %50 = dma.hbm_to_vmem [thread:$0]  %s3, 2048, %s45, [#allocation6], 128, 128, 8
    $region17: #{decoder_net_forward.1} parent=1 // pred_fallthru
      _
    // Predicated region
    $region18: #{decoder_net_forward.1} parent=1 // pred_check
      _
    $region19: #{decoder_net_forward.1} parent=1 // pred_check_branch
      %52 = sbr.rel (0) target = $region21
    $region20: #{decoder_net_forward.1} parent=1 // pred_region
      _
    $region21: #{decoder_net_forward.1} parent=1 // pred_fallthru
      _
    // Predicated region
    $region22: #{decoder_net_forward.1} parent=1 // pred_check
      _
    $region23: #{decoder_net_forward.1} parent=1 // pred_check_branch
      %54 = sbr.rel (0) target = $region25
    $region24: #{decoder_net_forward.1} parent=1 // pred_region
      %s56 = ssub.s32 8192, 8192
      %57 = vsyncadd [#allocation6], %s56
      %s58 = sshll.u32 [#allocation7], 4
      %s59 = int_to_ptr.vmem [resolvable:$true] %s58
      %64 = dma.hbm_to_vmem [thread:$0]  %s5, 8192, %s59, [#allocation6], 256, 256, 16
    $region25: #{decoder_net_forward.1} parent=1 // pred_fallthru
      _
    // Predicated region
    $region26: #{decoder_net_forward.1} parent=1 // pred_check
      _
    $region27: #{decoder_net_forward.1} parent=1 // pred_check_branch
      %66 = sbr.rel (0) target = $region29
    $region28: #{decoder_net_forward.1} parent=1 // pred_region
      _
    $region29: #{decoder_net_forward.1} parent=1 // pred_fallthru
      _
    // Predicated region
    $region30: #{decoder_net_forward.1} parent=1 // pred_check
      _
    $region31: #{decoder_net_forward.1} parent=1 // pred_check_branch
      %68 = sbr.rel (0) target = $region33
    $region32: #{decoder_net_forward.1} parent=1 // pred_region
      %s70 = ssub.s32 8192, 8192
      %71 = vsyncadd [#allocation9], %s70
      %s72 = sshll.u32 [#allocation8], 4
      %s73 = int_to_ptr.vmem [resolvable:$true] %s72
      %78 = dma.hbm_to_vmem [thread:$0]  %s7, 8192, %s73, [#allocation9], 128, 128, 8
    $region33: #{decoder_net_forward.1} parent=1 // pred_fallthru
      _
    // Predicated region
    $region34: #{decoder_net_forward.1} parent=1 // pred_check
      _
    $region35: #{decoder_net_forward.1} parent=1 // pred_check_branch
      %80 = sbr.rel (0) target = $region37
    $region36: #{decoder_net_forward.1} parent=1 // pred_region
      _
    $region37: #{decoder_net_forward.1} parent=1 // pred_fallthru
      _
    // Predicated region
    $region38: #{decoder_net_forward.1} parent=1 // pred_check
      _
    $region39: #{decoder_net_forward.1} parent=1 // pred_check_branch
      %82 = sbr.rel (0) target = $region41
    $region40: #{decoder_net_forward.1} parent=1 // pred_region
      %s84 = ssub.s32 2048, 2048
      %85 = vsyncadd [#allocation9], %s84
      %s86 = sshll.u32 [#allocation10], 4
      %s87 = int_to_ptr.vmem [resolvable:$true] %s86
      %92 = dma.hbm_to_vmem [thread:$0]  %s9, 2048, %s87, [#allocation9], 64, 64, 4
    $region41: #{decoder_net_forward.1} parent=1 // pred_fallthru
      _
    // Predicated region
    $region42: #{decoder_net_forward.1} parent=1 // pred_check
      _
    $region43: #{decoder_net_forward.1} parent=1 // pred_check_branch
      %94 = sbr.rel (0) target = $region45
    $region44: #{decoder_net_forward.1} parent=1 // pred_region
      _
    $region45: #{decoder_net_forward.1} parent=1 // pred_fallthru
      _
    // Predicated region
    $region46: #{decoder_net_forward.1} parent=1 // pred_check
      _
    $region47: #{decoder_net_forward.1} parent=1 // pred_check_branch
      %96 = sbr.rel (0) target = $region49
    $region48: #{decoder_net_forward.1} parent=1 // pred_region
      %s98 = ssub.s32 7168, 7168
      %99 = vsyncadd [#allocation12], %s98
      %s100 = sshll.u32 [#allocation11], 4
      %s101 = int_to_ptr.vmem [resolvable:$true] %s100
      %106 = dma.hbm_to_vmem [thread:$0]  %s11, 7168, %s101, [#allocation12], 448, 448, 28
    $region49: #{decoder_net_forward.1} parent=1 // pred_fallthru
      _
    // Predicated region
    $region50: #{decoder_net_forward.1} parent=1 // pred_check
      _
    $region51: #{decoder_net_forward.1} parent=1 // pred_check_branch
      %108 = sbr.rel (0) target = $region53
    $region52: #{decoder_net_forward.1} parent=1 // pred_region
      _
    $region53: #{decoder_net_forward.1} parent=1 // pred_fallthru
      _
    // Predicated region
    $region54: #{decoder_net_forward.1} parent=1 // pred_check
      _
    $region55: #{decoder_net_forward.1} parent=1 // pred_check_branch
      %110 = sbr.rel (0) target = $region57
    $region56: #{decoder_net_forward.1} parent=1 // pred_region
      %111 = dma.done [#allocation3], 1024
    $region57: #{decoder_net_forward.1} parent=1 // pred_fallthru
      _
    // Predicated region
    $region58: #{decoder_net_forward.1} parent=1 // pred_check
      _
    $region59: #{decoder_net_forward.1} parent=1 // pred_check_branch
      %113 = sbr.rel (0) target = $region61
    $region60: #{decoder_net_forward.1} parent=1 // pred_region
      %114 = dma.done [#allocation6], 2048
    $region61: #{decoder_net_forward.1} parent=1 // pred_fallthru
      _
    // Predicated region
    $region62: #{decoder_net_forward.1} parent=1 // pred_check
      _
    $region63: #{decoder_net_forward.1} parent=1 // pred_check_branch
      %116 = sbr.rel (0) target = $region65
    $region64: #{decoder_net_forward.1} parent=1 // pred_region
      %117 = dma.done [#allocation6], 8192
    $region65: #{decoder_net_forward.1} parent=1 // pred_fallthru
      _
    // Predicated region
    $region66: #{decoder_net_forward.1} parent=1 // pred_check
      _
    $region67: #{decoder_net_forward.1} parent=1 // pred_check_branch
      %119 = sbr.rel (0) target = $region69
    $region68: #{decoder_net_forward.1} parent=1 // pred_region
      %120 = dma.done [#allocation9], 8192
    $region69: #{decoder_net_forward.1} parent=1 // pred_fallthru
      _
    // Predicated region
    $region70: #{decoder_net_forward.1} parent=1 // pred_check
      _
    $region71: #{decoder_net_forward.1} parent=1 // pred_check_branch
      %122 = sbr.rel (0) target = $region73
    $region72: #{decoder_net_forward.1} parent=1 // pred_region
      %123 = dma.done [#allocation9], 2048
    $region73: #{decoder_net_forward.1} parent=1 // pred_fallthru
      _
    // Predicated region
    $region74: #{decoder_net_forward.1} parent=1 // pred_check
      _
    $region75: #{decoder_net_forward.1} parent=1 // pred_check_branch
      %125 = sbr.rel (0) target = $region77
    $region76: #{decoder_net_forward.1} parent=1 // pred_region
      %126 = dma.done [#allocation12], 7168
    $region77: #{decoder_net_forward.1} parent=1 // pred_fallthru
      _
    %v128 = vld [vmem:[%s0] sm:$0xf]
    %v129 = vld [vmem:[#allocation2] sm:$0xf]
    %v130 = vld [vmem:[#allocation2 + $0x4] sm:$0xf]
    %v131 = vld [vmem:[#allocation2 + $0x8] sm:$0xf]
    %v132 = vld [vmem:[#allocation2 + $0xc] sm:$0xf]
    %v133 = vld [vmem:[#allocation2 + $0x10] sm:$0xf]
    %v134 = vld [vmem:[#allocation2 + $0x14] sm:$0xf]
    %v135 = vld [vmem:[#allocation2 + $0x18] sm:$0xf]
    %v136 = vld [vmem:[#allocation2 + $0x1c] sm:$0xf]
    %v137 = vld [vmem:[#allocation2 + $0x20] sm:$0xf]
    %v138 = vld [vmem:[#allocation2 + $0x24] sm:$0xf]
    %v139 = vld [vmem:[#allocation2 + $0x28] sm:$0xf]
    %v140 = vld [vmem:[#allocation2 + $0x2c] sm:$0xf]
    %v141 = vld [vmem:[#allocation2 + $0x30] sm:$0xf]
    %v142 = vld [vmem:[#allocation2 + $0x34] sm:$0xf]
    %v143 = vld [vmem:[#allocation2 + $0x38] sm:$0xf]
    %v144 = vld [vmem:[#allocation2 + $0x3c] sm:$0xf]
    %v145 = vld [vmem:[%s2] sm:$0x1]
    %v147 = vlaneseq
    %v148 = vshrl.u32 %v147, 7
    %v149 = vsub.s32 0, %v148
    %v150 = vrot.slane %v145, %v149
    %v168 = vunpack.c.l.b16 %v129
    %v169 = vunpack.c.l.b16 %v130
    %v170 = vunpack.c.l.b16 %v131
    %v171 = vunpack.c.l.b16 %v132
    %v172 = vunpack.c.l.b16 %v133
    %v173 = vunpack.c.l.b16 %v134
    %v174 = vunpack.c.l.b16 %v135
    %v175 = vunpack.c.l.b16 %v136
    %v176 = vunpack.c.l.b16 %v137
    %v177 = vunpack.c.l.b16 %v138
    %v178 = vunpack.c.l.b16 %v139
    %v179 = vunpack.c.l.b16 %v140
    %v180 = vunpack.c.l.b16 %v141
    %v181 = vunpack.c.l.b16 %v142
    %v182 = vunpack.c.l.b16 %v143
    %v183 = vunpack.c.l.b16 %v144
    %v184 = vpack.c.b16 %v169, %v168
    %v185 = vpack.c.b16 %v171, %v170
    %v186 = vpack.c.b16 %v173, %v172
    %v187 = vpack.c.b16 %v175, %v174
    %v188 = vpack.c.b16 %v177, %v176
    %v189 = vpack.c.b16 %v179, %v178
    %v190 = vpack.c.b16 %v181, %v180
    %v191 = vpack.c.b16 %v183, %v182
    %200 = vmatprep.subr.bf16.mxu0 0
    %201 = vmatpush1.bf16.msra.mxu0 %v191
    %202 = vmatprep.subr.bf16.mxu0 0
    %203 = vmatpush1.bf16.msra.mxu0 %v190
    %204 = vmatprep.subr.bf16.mxu0 0
    %205 = vmatpush1.bf16.msra.mxu0 %v189
    %206 = vmatprep.subr.bf16.mxu0 0
    %207 = vmatpush1.bf16.msra.mxu0 %v188
    %208 = vmatprep.subr.bf16.mxu0 0
    %209 = vmatpush1.bf16.msra.mxu0 %v187
    %210 = vmatprep.subr.bf16.mxu0 0
    %211 = vmatpush1.bf16.msra.mxu0 %v186
    %212 = vmatprep.subr.bf16.mxu0 0
    %213 = vmatpush1.bf16.msra.mxu0 %v185
    %214 = vmatprep.subr.bf16.mxu0 0
    %215 = vmatpush1.bf16.msra.mxu0 %v184
    %216 = vmatprep.subr.bf16.mxu0 0
    %217 = vmatpush2.bf16.msra.mxu0 0
    %218 = vmatprep.subr.bf16.mxu0 0
    %219 = vmatpush2.bf16.msra.mxu0 0
    %220 = vmatprep.subr.bf16.mxu0 0
    %221 = vmatpush2.bf16.msra.mxu0 0
    %222 = vmatprep.subr.bf16.mxu0 0
    %223 = vmatpush2.bf16.msra.mxu0 0
    %224 = vmatprep.subr.bf16.mxu0 0
    %225 = vmatpush2.bf16.msra.mxu0 0
    %226 = vmatprep.subr.bf16.mxu0 0
    %227 = vmatpush2.bf16.msra.mxu0 0
    %228 = vmatprep.subr.bf16.mxu0 0
    %229 = vmatpush2.bf16.msra.mxu0 0
    %230 = vmatprep.subr.bf16.mxu0 0
    %231 = vmatpush2.bf16.msra.mxu0 0
    %232 = vmatprep.mubr.bf16.mxu0 0
    %233 = vmatmul.mubr.bf16.gmra.mxu0 %v128
    %v234 = vpop.f32.mrf.mxu0
    %v235 = vadd.f32 %v150, %v234
    %v236 = vpop.f32.mrf.mxu0
    %v237 = vpop.f32.mrf.mxu0
    %v238 = vpop.f32.mrf.mxu0
    %239 = vdwg.mxu0
    %v240 = vmax.f32 %v235, 0.0
    %v241 = vpack.c.bf16 %v240, %v240
    %v242 = vld [vmem:[#allocation5] sm:$0xff]
    %v243 = vld [vmem:[#allocation5 + $0x8] sm:$0xff]
    %v244 = vld [vmem:[#allocation5 + $0x10] sm:$0xff]
    %v245 = vld [vmem:[#allocation5 + $0x18] sm:$0xff]
    %v246 = vld [vmem:[#allocation5 + $0x20] sm:$0xff]
    %v247 = vld [vmem:[#allocation5 + $0x28] sm:$0xff]
    %v248 = vld [vmem:[#allocation5 + $0x30] sm:$0xff]
    %v249 = vld [vmem:[#allocation5 + $0x38] sm:$0xff]
    %v250 = vld [vmem:[#allocation5 + $0x40] sm:$0xff]
    %v251 = vld [vmem:[#allocation5 + $0x48] sm:$0xff]
    %v252 = vld [vmem:[#allocation5 + $0x50] sm:$0xff]
    %v253 = vld [vmem:[#allocation5 + $0x58] sm:$0xff]
    %v254 = vld [vmem:[#allocation5 + $0x60] sm:$0xff]
    %v255 = vld [vmem:[#allocation5 + $0x68] sm:$0xff]
    %v256 = vld [vmem:[#allocation5 + $0x70] sm:$0xff]
    %v257 = vld [vmem:[#allocation5 + $0x78] sm:$0xff]
    %v258 = vld [vmem:[%s4] sm:$0x3]
    %v260 = vlaneseq
    %v261 = vshrl.u32 %v260, 7
    %v262 = vsub.s32 0, %v261
    %v263 = vrot.slane %v258, %v262
    %v264 = vlaneseq
    %v265 = vshrl.u32 %v264, 7
    %v266 = vsub.s32 1, %v265
    %v267 = vrot.slane %v258, %v266
    %v286 = vunpack.c.l.b16 %v242
    %v287 = vunpack.c.h.b16 %v242
    %v288 = vunpack.c.l.b16 %v243
    %v289 = vunpack.c.h.b16 %v243
    %v290 = vunpack.c.l.b16 %v244
    %v291 = vunpack.c.h.b16 %v244
    %v292 = vunpack.c.l.b16 %v245
    %v293 = vunpack.c.h.b16 %v245
    %v294 = vunpack.c.l.b16 %v246
    %v295 = vunpack.c.h.b16 %v246
    %v296 = vunpack.c.l.b16 %v247
    %v297 = vunpack.c.h.b16 %v247
    %v298 = vunpack.c.l.b16 %v248
    %v299 = vunpack.c.h.b16 %v248
    %v300 = vunpack.c.l.b16 %v249
    %v301 = vunpack.c.h.b16 %v249
    %v302 = vunpack.c.l.b16 %v250
    %v303 = vunpack.c.h.b16 %v250
    %v304 = vunpack.c.l.b16 %v251
    %v305 = vunpack.c.h.b16 %v251
    %v306 = vunpack.c.l.b16 %v252
    %v307 = vunpack.c.h.b16 %v252
    %v308 = vunpack.c.l.b16 %v253
    %v309 = vunpack.c.h.b16 %v253
    %v310 = vunpack.c.l.b16 %v254
    %v311 = vunpack.c.h.b16 %v254
    %v312 = vunpack.c.l.b16 %v255
    %v313 = vunpack.c.h.b16 %v255
    %v314 = vunpack.c.l.b16 %v256
    %v315 = vunpack.c.h.b16 %v256
    %v316 = vunpack.c.l.b16 %v257
    %v317 = vunpack.c.h.b16 %v257
    %v318 = vpack.c.b16 %v288, %v286
    %v319 = vpack.c.b16 %v289, %v287
    %v320 = vpack.c.b16 %v292, %v290
    %v321 = vpack.c.b16 %v293, %v291
    %v322 = vpack.c.b16 %v296, %v294
    %v323 = vpack.c.b16 %v297, %v295
    %v324 = vpack.c.b16 %v300, %v298
    %v325 = vpack.c.b16 %v301, %v299
    %v326 = vpack.c.b16 %v304, %v302
    %v327 = vpack.c.b16 %v305, %v303
    %v328 = vpack.c.b16 %v308, %v306
    %v329 = vpack.c.b16 %v309, %v307
    %v330 = vpack.c.b16 %v312, %v310
    %v331 = vpack.c.b16 %v313, %v311
    %v332 = vpack.c.b16 %v316, %v314
    %v333 = vpack.c.b16 %v317, %v315
    %350 = vmatprep.subr.bf16.mxu0 %v333
    %351 = vmatpush1.bf16.msra.mxu0 %v332
    %352 = vmatprep.subr.bf16.mxu0 %v331
    %353 = vmatpush1.bf16.msra.mxu0 %v330
    %354 = vmatprep.subr.bf16.mxu0 %v329
    %355 = vmatpush1.bf16.msra.mxu0 %v328
    %356 = vmatprep.subr.bf16.mxu0 %v327
    %357 = vmatpush1.bf16.msra.mxu0 %v326
    %358 = vmatprep.subr.bf16.mxu0 %v325
    %359 = vmatpush1.bf16.msra.mxu0 %v324
    %360 = vmatprep.subr.bf16.mxu0 %v323
    %361 = vmatpush1.bf16.msra.mxu0 %v322
    %362 = vmatprep.subr.bf16.mxu0 %v321
    %363 = vmatpush1.bf16.msra.mxu0 %v320
    %364 = vmatprep.subr.bf16.mxu0 %v319
    %365 = vmatpush1.bf16.msra.mxu0 %v318
    %366 = vmatprep.subr.bf16.mxu0 0
    %367 = vmatpush2.bf16.msra.mxu0 0
    %368 = vmatprep.subr.bf16.mxu0 0
    %369 = vmatpush2.bf16.msra.mxu0 0
    %370 = vmatprep.subr.bf16.mxu0 0
    %371 = vmatpush2.bf16.msra.mxu0 0
    %372 = vmatprep.subr.bf16.mxu0 0
    %373 = vmatpush2.bf16.msra.mxu0 0
    %374 = vmatprep.subr.bf16.mxu0 0
    %375 = vmatpush2.bf16.msra.mxu0 0
    %376 = vmatprep.subr.bf16.mxu0 0
    %377 = vmatpush2.bf16.msra.mxu0 0
    %378 = vmatprep.subr.bf16.mxu0 0
    %379 = vmatpush2.bf16.msra.mxu0 0
    %380 = vmatprep.subr.bf16.mxu0 0
    %381 = vmatpush2.bf16.msra.mxu0 0
    %382 = vmatprep.mubr.bf16.mxu0 0
    %383 = vmatmul.mubr.bf16.gmra.mxu0 %v241
    %v384 = vpop.f32.mrf.mxu0
    %v385 = vadd.f32 %v263, %v384
    %v386 = vpop.f32.mrf.mxu0
    %v387 = vadd.f32 %v267, %v386
    %v388 = vpop.f32.mrf.mxu0
    %v389 = vpop.f32.mrf.mxu0
    %390 = vdwg.mxu0
    %v391 = vmax.f32 %v385, 0.0
    %v392 = vmax.f32 %v387, 0.0
    %v393 = vpack.c.bf16 %v391, %v391
    %v394 = vpack.c.bf16 %v392, %v392
    %v395 = vld [vmem:[#allocation7] sm:$0xff]
    %v396 = vld [vmem:[#allocation7 + $0x8] sm:$0xff]
    %v397 = vld [vmem:[#allocation7 + $0x10] sm:$0xff]
    %v398 = vld [vmem:[#allocation7 + $0x18] sm:$0xff]
    %v399 = vld [vmem:[#allocation7 + $0x20] sm:$0xff]
    %v400 = vld [vmem:[#allocation7 + $0x28] sm:$0xff]
    %v401 = vld [vmem:[#allocation7 + $0x30] sm:$0xff]
    %v402 = vld [vmem:[#allocation7 + $0x38] sm:$0xff]
    %v403 = vld [vmem:[#allocation7 + $0x40] sm:$0xff]
    %v404 = vld [vmem:[#allocation7 + $0x48] sm:$0xff]
    %v405 = vld [vmem:[#allocation7 + $0x50] sm:$0xff]
    %v406 = vld [vmem:[#allocation7 + $0x58] sm:$0xff]
    %v407 = vld [vmem:[#allocation7 + $0x60] sm:$0xff]
    %v408 = vld [vmem:[#allocation7 + $0x68] sm:$0xff]
    %v409 = vld [vmem:[#allocation7 + $0x70] sm:$0xff]
    %v410 = vld [vmem:[#allocation7 + $0x78] sm:$0xff]
    %v411 = vld [vmem:[#allocation7 + $0x80] sm:$0xff]
    %v412 = vld [vmem:[#allocation7 + $0x88] sm:$0xff]
    %v413 = vld [vmem:[#allocation7 + $0x90] sm:$0xff]
    %v414 = vld [vmem:[#allocation7 + $0x98] sm:$0xff]
    %v415 = vld [vmem:[#allocation7 + $0xa0] sm:$0xff]
    %v416 = vld [vmem:[#allocation7 + $0xa8] sm:$0xff]
    %v417 = vld [vmem:[#allocation7 + $0xb0] sm:$0xff]
    %v418 = vld [vmem:[#allocation7 + $0xb8] sm:$0xff]
    %v419 = vld [vmem:[#allocation7 + $0xc0] sm:$0xff]
    %v420 = vld [vmem:[#allocation7 + $0xc8] sm:$0xff]
    %v421 = vld [vmem:[#allocation7 + $0xd0] sm:$0xff]
    %v422 = vld [vmem:[#allocation7 + $0xd8] sm:$0xff]
    %v423 = vld [vmem:[#allocation7 + $0xe0] sm:$0xff]
    %v424 = vld [vmem:[#allocation7 + $0xe8] sm:$0xff]
    %v425 = vld [vmem:[#allocation7 + $0xf0] sm:$0xff]
    %v426 = vld [vmem:[#allocation7 + $0xf8] sm:$0xff]
    %v427 = vld [vmem:[#allocation7 + $0x100] sm:$0xff]
    %v428 = vld [vmem:[#allocation7 + $0x108] sm:$0xff]
    %v429 = vld [vmem:[#allocation7 + $0x110] sm:$0xff]
    %v430 = vld [vmem:[#allocation7 + $0x118] sm:$0xff]
    %v431 = vld [vmem:[#allocation7 + $0x120] sm:$0xff]
    %v432 = vld [vmem:[#allocation7 + $0x128] sm:$0xff]
    %v433 = vld [vmem:[#allocation7 + $0x130] sm:$0xff]
    %v434 = vld [vmem:[#allocation7 + $0x138] sm:$0xff]
    %v435 = vld [vmem:[#allocation7 + $0x140] sm:$0xff]
    %v436 = vld [vmem:[#allocation7 + $0x148] sm:$0xff]
    %v437 = vld [vmem:[#allocation7 + $0x150] sm:$0xff]
    %v438 = vld [vmem:[#allocation7 + $0x158] sm:$0xff]
    %v439 = vld [vmem:[#allocation7 + $0x160] sm:$0xff]
    %v440 = vld [vmem:[#allocation7 + $0x168] sm:$0xff]
    %v441 = vld [vmem:[#allocation7 + $0x170] sm:$0xff]
    %v442 = vld [vmem:[#allocation7 + $0x178] sm:$0xff]
    %v443 = vld [vmem:[#allocation7 + $0x180] sm:$0xff]
    %v444 = vld [vmem:[#allocation7 + $0x188] sm:$0xff]
    %v445 = vld [vmem:[#allocation7 + $0x190] sm:$0xff]
    %v446 = vld [vmem:[#allocation7 + $0x198] sm:$0xff]
    %v447 = vld [vmem:[#allocation7 + $0x1a0] sm:$0xff]
    %v448 = vld [vmem:[#allocation7 + $0x1a8] sm:$0xff]
    %v449 = vld [vmem:[#allocation7 + $0x1b0] sm:$0xff]
    %v450 = vld [vmem:[#allocation7 + $0x1b8] sm:$0xff]
    %v451 = vld [vmem:[#allocation7 + $0x1c0] sm:$0xff]
    %v452 = vld [vmem:[#allocation7 + $0x1c8] sm:$0xff]
    %v453 = vld [vmem:[#allocation7 + $0x1d0] sm:$0xff]
    %v454 = vld [vmem:[#allocation7 + $0x1d8] sm:$0xff]
    %v455 = vld [vmem:[#allocation7 + $0x1e0] sm:$0xff]
    %v456 = vld [vmem:[#allocation7 + $0x1e8] sm:$0xff]
    %v457 = vld [vmem:[#allocation7 + $0x1f0] sm:$0xff]
    %v458 = vld [vmem:[#allocation7 + $0x1f8] sm:$0xff]
    %v459 = vld [vmem:[%s6] sm:$0xf]
    %v461 = vlaneseq
    %v462 = vshrl.u32 %v461, 7
    %v463 = vsub.s32 0, %v462
    %v464 = vrot.slane %v459, %v463
    %v465 = vlaneseq
    %v466 = vshrl.u32 %v465, 7
    %v467 = vsub.s32 1, %v466
    %v468 = vrot.slane %v459, %v467
    %v469 = vlaneseq
    %v470 = vshrl.u32 %v469, 7
    %v471 = vsub.s32 2, %v470
    %v472 = vrot.slane %v459, %v471
    %v473 = vlaneseq
    %v474 = vshrl.u32 %v473, 7
    %v475 = vsub.s32 3, %v474
    %v476 = vrot.slane %v459, %v475
    %v545 = vunpack.c.l.b16 %v395
    %v546 = vunpack.c.h.b16 %v395
    %v547 = vunpack.c.l.b16 %v396
    %v548 = vunpack.c.h.b16 %v396
    %v549 = vunpack.c.l.b16 %v397
    %v550 = vunpack.c.h.b16 %v397
    %v551 = vunpack.c.l.b16 %v398
    %v552 = vunpack.c.h.b16 %v398
    %v553 = vunpack.c.l.b16 %v399
    %v554 = vunpack.c.h.b16 %v399
    %v555 = vunpack.c.l.b16 %v400
    %v556 = vunpack.c.h.b16 %v400
    %v557 = vunpack.c.l.b16 %v401
    %v558 = vunpack.c.h.b16 %v401
    %v559 = vunpack.c.l.b16 %v402
    %v560 = vunpack.c.h.b16 %v402
    %v561 = vunpack.c.l.b16 %v403
    %v562 = vunpack.c.h.b16 %v403
    %v563 = vunpack.c.l.b16 %v404
    %v564 = vunpack.c.h.b16 %v404
    %v565 = vunpack.c.l.b16 %v405
    %v566 = vunpack.c.h.b16 %v405
    %v567 = vunpack.c.l.b16 %v406
    %v568 = vunpack.c.h.b16 %v406
    %v569 = vunpack.c.l.b16 %v407
    %v570 = vunpack.c.h.b16 %v407
    %v571 = vunpack.c.l.b16 %v408
    %v572 = vunpack.c.h.b16 %v408
    %v573 = vunpack.c.l.b16 %v409
    %v574 = vunpack.c.h.b16 %v409
    %v575 = vunpack.c.l.b16 %v410
    %v576 = vunpack.c.h.b16 %v410
    %v577 = vunpack.c.l.b16 %v411
    %v578 = vunpack.c.h.b16 %v411
    %v579 = vunpack.c.l.b16 %v412
    %v580 = vunpack.c.h.b16 %v412
    %v581 = vunpack.c.l.b16 %v413
    %v582 = vunpack.c.h.b16 %v413
    %v583 = vunpack.c.l.b16 %v414
    %v584 = vunpack.c.h.b16 %v414
    %v585 = vunpack.c.l.b16 %v415
    %v586 = vunpack.c.h.b16 %v415
    %v587 = vunpack.c.l.b16 %v416
    %v588 = vunpack.c.h.b16 %v416
    %v589 = vunpack.c.l.b16 %v417
    %v590 = vunpack.c.h.b16 %v417
    %v591 = vunpack.c.l.b16 %v418
    %v592 = vunpack.c.h.b16 %v418
    %v593 = vunpack.c.l.b16 %v419
    %v594 = vunpack.c.h.b16 %v419
    %v595 = vunpack.c.l.b16 %v420
    %v596 = vunpack.c.h.b16 %v420
    %v597 = vunpack.c.l.b16 %v421
    %v598 = vunpack.c.h.b16 %v421
    %v599 = vunpack.c.l.b16 %v422
    %v600 = vunpack.c.h.b16 %v422
    %v601 = vunpack.c.l.b16 %v423
    %v602 = vunpack.c.h.b16 %v423
    %v603 = vunpack.c.l.b16 %v424
    %v604 = vunpack.c.h.b16 %v424
    %v605 = vunpack.c.l.b16 %v425
    %v606 = vunpack.c.h.b16 %v425
    %v607 = vunpack.c.l.b16 %v426
    %v608 = vunpack.c.h.b16 %v426
    %v609 = vunpack.c.l.b16 %v427
    %v610 = vunpack.c.h.b16 %v427
    %v611 = vunpack.c.l.b16 %v428
    %v612 = vunpack.c.h.b16 %v428
    %v613 = vunpack.c.l.b16 %v429
    %v614 = vunpack.c.h.b16 %v429
    %v615 = vunpack.c.l.b16 %v430
    %v616 = vunpack.c.h.b16 %v430
    %v617 = vunpack.c.l.b16 %v431
    %v618 = vunpack.c.h.b16 %v431
    %v619 = vunpack.c.l.b16 %v432
    %v620 = vunpack.c.h.b16 %v432
    %v621 = vunpack.c.l.b16 %v433
    %v622 = vunpack.c.h.b16 %v433
    %v623 = vunpack.c.l.b16 %v434
    %v624 = vunpack.c.h.b16 %v434
    %v625 = vunpack.c.l.b16 %v435
    %v626 = vunpack.c.h.b16 %v435
    %v627 = vunpack.c.l.b16 %v436
    %v628 = vunpack.c.h.b16 %v436
    %v629 = vunpack.c.l.b16 %v437
    %v630 = vunpack.c.h.b16 %v437
    %v631 = vunpack.c.l.b16 %v438
    %v632 = vunpack.c.h.b16 %v438
    %v633 = vunpack.c.l.b16 %v439
    %v634 = vunpack.c.h.b16 %v439
    %v635 = vunpack.c.l.b16 %v440
    %v636 = vunpack.c.h.b16 %v440
    %v637 = vunpack.c.l.b16 %v441
    %v638 = vunpack.c.h.b16 %v441
    %v639 = vunpack.c.l.b16 %v442
    %v640 = vunpack.c.h.b16 %v442
    %v641 = vunpack.c.l.b16 %v443
    %v642 = vunpack.c.h.b16 %v443
    %v643 = vunpack.c.l.b16 %v444
    %v644 = vunpack.c.h.b16 %v444
    %v645 = vunpack.c.l.b16 %v445
    %v646 = vunpack.c.h.b16 %v445
    %v647 = vunpack.c.l.b16 %v446
    %v648 = vunpack.c.h.b16 %v446
    %v649 = vunpack.c.l.b16 %v447
    %v650 = vunpack.c.h.b16 %v447
    %v651 = vunpack.c.l.b16 %v448
    %v652 = vunpack.c.h.b16 %v448
    %v653 = vunpack.c.l.b16 %v449
    %v654 = vunpack.c.h.b16 %v449
    %v655 = vunpack.c.l.b16 %v450
    %v656 = vunpack.c.h.b16 %v450
    %v657 = vunpack.c.l.b16 %v451
    %v658 = vunpack.c.h.b16 %v451
    %v659 = vunpack.c.l.b16 %v452
    %v660 = vunpack.c.h.b16 %v452
    %v661 = vunpack.c.l.b16 %v453
    %v662 = vunpack.c.h.b16 %v453
    %v663 = vunpack.c.l.b16 %v454
    %v664 = vunpack.c.h.b16 %v454
    %v665 = vunpack.c.l.b16 %v455
    %v666 = vunpack.c.h.b16 %v455
    %v667 = vunpack.c.l.b16 %v456
    %v668 = vunpack.c.h.b16 %v456
    %v669 = vunpack.c.l.b16 %v457
    %v670 = vunpack.c.h.b16 %v457
    %v671 = vunpack.c.l.b16 %v458
    %v672 = vunpack.c.h.b16 %v458
    %v673 = vpack.c.b16 %v549, %v545
    %v674 = vpack.c.b16 %v550, %v546
    %v675 = vpack.c.b16 %v551, %v547
    %v676 = vpack.c.b16 %v552, %v548
    %v677 = vpack.c.b16 %v557, %v553
    %v678 = vpack.c.b16 %v558, %v554
    %v679 = vpack.c.b16 %v559, %v555
    %v680 = vpack.c.b16 %v560, %v556
    %v681 = vpack.c.b16 %v565, %v561
    %v682 = vpack.c.b16 %v566, %v562
    %v683 = vpack.c.b16 %v567, %v563
    %v684 = vpack.c.b16 %v568, %v564
    %v685 = vpack.c.b16 %v573, %v569
    %v686 = vpack.c.b16 %v574, %v570
    %v687 = vpack.c.b16 %v575, %v571
    %v688 = vpack.c.b16 %v576, %v572
    %v689 = vpack.c.b16 %v581, %v577
    %v690 = vpack.c.b16 %v582, %v578
    %v691 = vpack.c.b16 %v583, %v579
    %v692 = vpack.c.b16 %v584, %v580
    %v693 = vpack.c.b16 %v589, %v585
    %v694 = vpack.c.b16 %v590, %v586
    %v695 = vpack.c.b16 %v591, %v587
    %v696 = vpack.c.b16 %v592, %v588
    %v697 = vpack.c.b16 %v597, %v593
    %v698 = vpack.c.b16 %v598, %v594
    %v699 = vpack.c.b16 %v599, %v595
    %v700 = vpack.c.b16 %v600, %v596
    %v701 = vpack.c.b16 %v605, %v601
    %v702 = vpack.c.b16 %v606, %v602
    %v703 = vpack.c.b16 %v607, %v603
    %v704 = vpack.c.b16 %v608, %v604
    %v705 = vpack.c.b16 %v613, %v609
    %v706 = vpack.c.b16 %v614, %v610
    %v707 = vpack.c.b16 %v615, %v611
    %v708 = vpack.c.b16 %v616, %v612
    %v709 = vpack.c.b16 %v621, %v617
    %v710 = vpack.c.b16 %v622, %v618
    %v711 = vpack.c.b16 %v623, %v619
    %v712 = vpack.c.b16 %v624, %v620
    %v713 = vpack.c.b16 %v629, %v625
    %v714 = vpack.c.b16 %v630, %v626
    %v715 = vpack.c.b16 %v631, %v627
    %v716 = vpack.c.b16 %v632, %v628
    %v717 = vpack.c.b16 %v637, %v633
    %v718 = vpack.c.b16 %v638, %v634
    %v719 = vpack.c.b16 %v639, %v635
    %v720 = vpack.c.b16 %v640, %v636
    %v721 = vpack.c.b16 %v645, %v641
    %v722 = vpack.c.b16 %v646, %v642
    %v723 = vpack.c.b16 %v647, %v643
    %v724 = vpack.c.b16 %v648, %v644
    %v725 = vpack.c.b16 %v653, %v649
    %v726 = vpack.c.b16 %v654, %v650
    %v727 = vpack.c.b16 %v655, %v651
    %v728 = vpack.c.b16 %v656, %v652
    %v729 = vpack.c.b16 %v661, %v657
    %v730 = vpack.c.b16 %v662, %v658
    %v731 = vpack.c.b16 %v663, %v659
    %v732 = vpack.c.b16 %v664, %v660
    %v733 = vpack.c.b16 %v669, %v665
    %v734 = vpack.c.b16 %v670, %v666
    %v735 = vpack.c.b16 %v671, %v667
    %v736 = vpack.c.b16 %v672, %v668
    %801 = vmatprep.subr.bf16.mxu0 %v702
    %802 = vmatpush1.bf16.msra.mxu0 %v701
    %803 = vmatprep.subr.bf16.mxu0 %v698
    %804 = vmatpush1.bf16.msra.mxu0 %v697
    %805 = vmatprep.subr.bf16.mxu0 %v694
    %806 = vmatpush1.bf16.msra.mxu0 %v693
    %807 = vmatprep.subr.bf16.mxu0 %v690
    %808 = vmatpush1.bf16.msra.mxu0 %v689
    %809 = vmatprep.subr.bf16.mxu0 %v686
    %810 = vmatpush1.bf16.msra.mxu0 %v685
    %811 = vmatprep.subr.bf16.mxu0 %v682
    %812 = vmatpush1.bf16.msra.mxu0 %v681
    %813 = vmatprep.subr.bf16.mxu0 %v678
    %814 = vmatpush1.bf16.msra.mxu0 %v677
    %815 = vmatprep.subr.bf16.mxu0 %v674
    %816 = vmatpush1.bf16.msra.mxu0 %v673
    %817 = vmatprep.subr.bf16.mxu0 %v734
    %818 = vmatpush2.bf16.msra.mxu0 %v733
    %819 = vmatprep.subr.bf16.mxu0 %v730
    %820 = vmatpush2.bf16.msra.mxu0 %v729
    %821 = vmatprep.subr.bf16.mxu0 %v726
    %822 = vmatpush2.bf16.msra.mxu0 %v725
    %823 = vmatprep.subr.bf16.mxu0 %v722
    %824 = vmatpush2.bf16.msra.mxu0 %v721
    %825 = vmatprep.subr.bf16.mxu0 %v718
    %826 = vmatpush2.bf16.msra.mxu0 %v717
    %827 = vmatprep.subr.bf16.mxu0 %v714
    %828 = vmatpush2.bf16.msra.mxu0 %v713
    %829 = vmatprep.subr.bf16.mxu0 %v710
    %830 = vmatpush2.bf16.msra.mxu0 %v709
    %831 = vmatprep.subr.bf16.mxu0 %v706
    %832 = vmatpush2.bf16.msra.mxu0 %v705
    %833 = vmatprep.mubr.bf16.mxu0 %v394
    %834 = vmatmul.mubr.bf16.gmra.mxu0 %v393
    %v835 = vpop.f32.mrf.mxu0
    %v836 = vadd.f32 %v464, %v835
    %v837 = vpop.f32.mrf.mxu0
    %v838 = vadd.f32 %v468, %v837
    %v839 = vpop.f32.mrf.mxu0
    %v840 = vpop.f32.mrf.mxu0
    %841 = vdwg.mxu0
    %842 = vmatprep.subr.bf16.mxu0 %v704
    %843 = vmatpush1.bf16.msra.mxu0 %v703
    %844 = vmatprep.subr.bf16.mxu0 %v700
    %845 = vmatpush1.bf16.msra.mxu0 %v699
    %846 = vmatprep.subr.bf16.mxu0 %v696
    %847 = vmatpush1.bf16.msra.mxu0 %v695
    %848 = vmatprep.subr.bf16.mxu0 %v692
    %849 = vmatpush1.bf16.msra.mxu0 %v691
    %850 = vmatprep.subr.bf16.mxu0 %v688
    %851 = vmatpush1.bf16.msra.mxu0 %v687
    %852 = vmatprep.subr.bf16.mxu0 %v684
    %853 = vmatpush1.bf16.msra.mxu0 %v683
    %854 = vmatprep.subr.bf16.mxu0 %v680
    %855 = vmatpush1.bf16.msra.mxu0 %v679
    %856 = vmatprep.subr.bf16.mxu0 %v676
    %857 = vmatpush1.bf16.msra.mxu0 %v675
    %858 = vmatprep.subr.bf16.mxu0 %v736
    %859 = vmatpush2.bf16.msra.mxu0 %v735
    %860 = vmatprep.subr.bf16.mxu0 %v732
    %861 = vmatpush2.bf16.msra.mxu0 %v731
    %862 = vmatprep.subr.bf16.mxu0 %v728
    %863 = vmatpush2.bf16.msra.mxu0 %v727
    %864 = vmatprep.subr.bf16.mxu0 %v724
    %865 = vmatpush2.bf16.msra.mxu0 %v723
    %866 = vmatprep.subr.bf16.mxu0 %v720
    %867 = vmatpush2.bf16.msra.mxu0 %v719
    %868 = vmatprep.subr.bf16.mxu0 %v716
    %869 = vmatpush2.bf16.msra.mxu0 %v715
    %870 = vmatprep.subr.bf16.mxu0 %v712
    %871 = vmatpush2.bf16.msra.mxu0 %v711
    %872 = vmatprep.subr.bf16.mxu0 %v708
    %873 = vmatpush2.bf16.msra.mxu0 %v707
    %874 = vmatprep.mubr.bf16.mxu0 %v394
    %875 = vmatmul.mubr.bf16.gmra.mxu0 %v393
    %v876 = vpop.f32.mrf.mxu0
    %v877 = vadd.f32 %v472, %v876
    %v878 = vpop.f32.mrf.mxu0
    %v879 = vadd.f32 %v476, %v878
    %v880 = vpop.f32.mrf.mxu0
    %v881 = vpop.f32.mrf.mxu0
    %882 = vdwg.mxu0
    %v883 = vmax.f32 %v836, 0.0
    %v884 = vmax.f32 %v838, 0.0
    %v885 = vmax.f32 %v877, 0.0
    %v886 = vmax.f32 %v879, 0.0
    %v887 = vpack.c.bf16 %v883, %v883
    %v888 = vpack.c.bf16 %v884, %v884
    %v889 = vpack.c.bf16 %v885, %v885
    %v890 = vpack.c.bf16 %v886, %v886
    %v891 = vld [vmem:[#allocation8] sm:$0xff]
    %v892 = vld [vmem:[#allocation8 + $0x8] sm:$0xff]
    %v893 = vld [vmem:[#allocation8 + $0x10] sm:$0xff]
    %v894 = vld [vmem:[#allocation8 + $0x18] sm:$0xff]
    %v895 = vld [vmem:[#allocation8 + $0x20] sm:$0xff]
    %v896 = vld [vmem:[#allocation8 + $0x28] sm:$0xff]
    %v897 = vld [vmem:[#allocation8 + $0x30] sm:$0xff]
    %v898 = vld [vmem:[#allocation8 + $0x38] sm:$0xff]
    %v899 = vld [vmem:[#allocation8 + $0x40] sm:$0xff]
    %v900 = vld [vmem:[#allocation8 + $0x48] sm:$0xff]
    %v901 = vld [vmem:[#allocation8 + $0x50] sm:$0xff]
    %v902 = vld [vmem:[#allocation8 + $0x58] sm:$0xff]
    %v903 = vld [vmem:[#allocation8 + $0x60] sm:$0xff]
    %v904 = vld [vmem:[#allocation8 + $0x68] sm:$0xff]
    %v905 = vld [vmem:[#allocation8 + $0x70] sm:$0xff]
    %v906 = vld [vmem:[#allocation8 + $0x78] sm:$0xff]
    %v907 = vld [vmem:[#allocation8 + $0x80] sm:$0xff]
    %v908 = vld [vmem:[#allocation8 + $0x88] sm:$0xff]
    %v909 = vld [vmem:[#allocation8 + $0x90] sm:$0xff]
    %v910 = vld [vmem:[#allocation8 + $0x98] sm:$0xff]
    %v911 = vld [vmem:[#allocation8 + $0xa0] sm:$0xff]
    %v912 = vld [vmem:[#allocation8 + $0xa8] sm:$0xff]
    %v913 = vld [vmem:[#allocation8 + $0xb0] sm:$0xff]
    %v914 = vld [vmem:[#allocation8 + $0xb8] sm:$0xff]
    %v915 = vld [vmem:[#allocation8 + $0xc0] sm:$0xff]
    %v916 = vld [vmem:[#allocation8 + $0xc8] sm:$0xff]
    %v917 = vld [vmem:[#allocation8 + $0xd0] sm:$0xff]
    %v918 = vld [vmem:[#allocation8 + $0xd8] sm:$0xff]
    %v919 = vld [vmem:[#allocation8 + $0xe0] sm:$0xff]
    %v920 = vld [vmem:[#allocation8 + $0xe8] sm:$0xff]
    %v921 = vld [vmem:[#allocation8 + $0xf0] sm:$0xff]
    %v922 = vld [vmem:[#allocation8 + $0xf8] sm:$0xff]
    %v923 = vld [vmem:[#allocation8 + $0x100] sm:$0xff]
    %v924 = vld [vmem:[#allocation8 + $0x108] sm:$0xff]
    %v925 = vld [vmem:[#allocation8 + $0x110] sm:$0xff]
    %v926 = vld [vmem:[#allocation8 + $0x118] sm:$0xff]
    %v927 = vld [vmem:[#allocation8 + $0x120] sm:$0xff]
    %v928 = vld [vmem:[#allocation8 + $0x128] sm:$0xff]
    %v929 = vld [vmem:[#allocation8 + $0x130] sm:$0xff]
    %v930 = vld [vmem:[#allocation8 + $0x138] sm:$0xff]
    %v931 = vld [vmem:[#allocation8 + $0x140] sm:$0xff]
    %v932 = vld [vmem:[#allocation8 + $0x148] sm:$0xff]
    %v933 = vld [vmem:[#allocation8 + $0x150] sm:$0xff]
    %v934 = vld [vmem:[#allocation8 + $0x158] sm:$0xff]
    %v935 = vld [vmem:[#allocation8 + $0x160] sm:$0xff]
    %v936 = vld [vmem:[#allocation8 + $0x168] sm:$0xff]
    %v937 = vld [vmem:[#allocation8 + $0x170] sm:$0xff]
    %v938 = vld [vmem:[#allocation8 + $0x178] sm:$0xff]
    %v939 = vld [vmem:[#allocation8 + $0x180] sm:$0xff]
    %v940 = vld [vmem:[#allocation8 + $0x188] sm:$0xff]
    %v941 = vld [vmem:[#allocation8 + $0x190] sm:$0xff]
    %v942 = vld [vmem:[#allocation8 + $0x198] sm:$0xff]
    %v943 = vld [vmem:[#allocation8 + $0x1a0] sm:$0xff]
    %v944 = vld [vmem:[#allocation8 + $0x1a8] sm:$0xff]
    %v945 = vld [vmem:[#allocation8 + $0x1b0] sm:$0xff]
    %v946 = vld [vmem:[#allocation8 + $0x1b8] sm:$0xff]
    %v947 = vld [vmem:[#allocation8 + $0x1c0] sm:$0xff]
    %v948 = vld [vmem:[#allocation8 + $0x1c8] sm:$0xff]
    %v949 = vld [vmem:[#allocation8 + $0x1d0] sm:$0xff]
    %v950 = vld [vmem:[#allocation8 + $0x1d8] sm:$0xff]
    %v951 = vld [vmem:[#allocation8 + $0x1e0] sm:$0xff]
    %v952 = vld [vmem:[#allocation8 + $0x1e8] sm:$0xff]
    %v953 = vld [vmem:[#allocation8 + $0x1f0] sm:$0xff]
    %v954 = vld [vmem:[#allocation8 + $0x1f8] sm:$0xff]
    %v955 = vld [vmem:[%s8] sm:$0x3]
    %v957 = vlaneseq
    %v958 = vshrl.u32 %v957, 7
    %v959 = vsub.s32 0, %v958
    %v960 = vrot.slane %v955, %v959
    %v961 = vlaneseq
    %v962 = vshrl.u32 %v961, 7
    %v963 = vsub.s32 1, %v962
    %v964 = vrot.slane %v955, %v963
    %v1031 = vunpack.c.l.b16 %v891
    %v1032 = vunpack.c.h.b16 %v891
    %v1033 = vunpack.c.l.b16 %v892
    %v1034 = vunpack.c.h.b16 %v892
    %v1035 = vunpack.c.l.b16 %v893
    %v1036 = vunpack.c.h.b16 %v893
    %v1037 = vunpack.c.l.b16 %v894
    %v1038 = vunpack.c.h.b16 %v894
    %v1039 = vunpack.c.l.b16 %v895
    %v1040 = vunpack.c.h.b16 %v895
    %v1041 = vunpack.c.l.b16 %v896
    %v1042 = vunpack.c.h.b16 %v896
    %v1043 = vunpack.c.l.b16 %v897
    %v1044 = vunpack.c.h.b16 %v897
    %v1045 = vunpack.c.l.b16 %v898
    %v1046 = vunpack.c.h.b16 %v898
    %v1047 = vunpack.c.l.b16 %v899
    %v1048 = vunpack.c.h.b16 %v899
    %v1049 = vunpack.c.l.b16 %v900
    %v1050 = vunpack.c.h.b16 %v900
    %v1051 = vunpack.c.l.b16 %v901
    %v1052 = vunpack.c.h.b16 %v901
    %v1053 = vunpack.c.l.b16 %v902
    %v1054 = vunpack.c.h.b16 %v902
    %v1055 = vunpack.c.l.b16 %v903
    %v1056 = vunpack.c.h.b16 %v903
    %v1057 = vunpack.c.l.b16 %v904
    %v1058 = vunpack.c.h.b16 %v904
    %v1059 = vunpack.c.l.b16 %v905
    %v1060 = vunpack.c.h.b16 %v905
    %v1061 = vunpack.c.l.b16 %v906
    %v1062 = vunpack.c.h.b16 %v906
    %v1063 = vunpack.c.l.b16 %v907
    %v1064 = vunpack.c.h.b16 %v907
    %v1065 = vunpack.c.l.b16 %v908
    %v1066 = vunpack.c.h.b16 %v908
    %v1067 = vunpack.c.l.b16 %v909
    %v1068 = vunpack.c.h.b16 %v909
    %v1069 = vunpack.c.l.b16 %v910
    %v1070 = vunpack.c.h.b16 %v910
    %v1071 = vunpack.c.l.b16 %v911
    %v1072 = vunpack.c.h.b16 %v911
    %v1073 = vunpack.c.l.b16 %v912
    %v1074 = vunpack.c.h.b16 %v912
    %v1075 = vunpack.c.l.b16 %v913
    %v1076 = vunpack.c.h.b16 %v913
    %v1077 = vunpack.c.l.b16 %v914
    %v1078 = vunpack.c.h.b16 %v914
    %v1079 = vunpack.c.l.b16 %v915
    %v1080 = vunpack.c.h.b16 %v915
    %v1081 = vunpack.c.l.b16 %v916
    %v1082 = vunpack.c.h.b16 %v916
    %v1083 = vunpack.c.l.b16 %v917
    %v1084 = vunpack.c.h.b16 %v917
    %v1085 = vunpack.c.l.b16 %v918
    %v1086 = vunpack.c.h.b16 %v918
    %v1087 = vunpack.c.l.b16 %v919
    %v1088 = vunpack.c.h.b16 %v919
    %v1089 = vunpack.c.l.b16 %v920
    %v1090 = vunpack.c.h.b16 %v920
    %v1091 = vunpack.c.l.b16 %v921
    %v1092 = vunpack.c.h.b16 %v921
    %v1093 = vunpack.c.l.b16 %v922
    %v1094 = vunpack.c.h.b16 %v922
    %v1095 = vunpack.c.l.b16 %v923
    %v1096 = vunpack.c.h.b16 %v923
    %v1097 = vunpack.c.l.b16 %v924
    %v1098 = vunpack.c.h.b16 %v924
    %v1099 = vunpack.c.l.b16 %v925
    %v1100 = vunpack.c.h.b16 %v925
    %v1101 = vunpack.c.l.b16 %v926
    %v1102 = vunpack.c.h.b16 %v926
    %v1103 = vunpack.c.l.b16 %v927
    %v1104 = vunpack.c.h.b16 %v927
    %v1105 = vunpack.c.l.b16 %v928
    %v1106 = vunpack.c.h.b16 %v928
    %v1107 = vunpack.c.l.b16 %v929
    %v1108 = vunpack.c.h.b16 %v929
    %v1109 = vunpack.c.l.b16 %v930
    %v1110 = vunpack.c.h.b16 %v930
    %v1111 = vunpack.c.l.b16 %v931
    %v1112 = vunpack.c.h.b16 %v931
    %v1113 = vunpack.c.l.b16 %v932
    %v1114 = vunpack.c.h.b16 %v932
    %v1115 = vunpack.c.l.b16 %v933
    %v1116 = vunpack.c.h.b16 %v933
    %v1117 = vunpack.c.l.b16 %v934
    %v1118 = vunpack.c.h.b16 %v934
    %v1119 = vunpack.c.l.b16 %v935
    %v1120 = vunpack.c.h.b16 %v935
    %v1121 = vunpack.c.l.b16 %v936
    %v1122 = vunpack.c.h.b16 %v936
    %v1123 = vunpack.c.l.b16 %v937
    %v1124 = vunpack.c.h.b16 %v937
    %v1125 = vunpack.c.l.b16 %v938
    %v1126 = vunpack.c.h.b16 %v938
    %v1127 = vunpack.c.l.b16 %v939
    %v1128 = vunpack.c.h.b16 %v939
    %v1129 = vunpack.c.l.b16 %v940
    %v1130 = vunpack.c.h.b16 %v940
    %v1131 = vunpack.c.l.b16 %v941
    %v1132 = vunpack.c.h.b16 %v941
    %v1133 = vunpack.c.l.b16 %v942
    %v1134 = vunpack.c.h.b16 %v942
    %v1135 = vunpack.c.l.b16 %v943
    %v1136 = vunpack.c.h.b16 %v943
    %v1137 = vunpack.c.l.b16 %v944
    %v1138 = vunpack.c.h.b16 %v944
    %v1139 = vunpack.c.l.b16 %v945
    %v1140 = vunpack.c.h.b16 %v945
    %v1141 = vunpack.c.l.b16 %v946
    %v1142 = vunpack.c.h.b16 %v946
    %v1143 = vunpack.c.l.b16 %v947
    %v1144 = vunpack.c.h.b16 %v947
    %v1145 = vunpack.c.l.b16 %v948
    %v1146 = vunpack.c.h.b16 %v948
    %v1147 = vunpack.c.l.b16 %v949
    %v1148 = vunpack.c.h.b16 %v949
    %v1149 = vunpack.c.l.b16 %v950
    %v1150 = vunpack.c.h.b16 %v950
    %v1151 = vunpack.c.l.b16 %v951
    %v1152 = vunpack.c.h.b16 %v951
    %v1153 = vunpack.c.l.b16 %v952
    %v1154 = vunpack.c.h.b16 %v952
    %v1155 = vunpack.c.l.b16 %v953
    %v1156 = vunpack.c.h.b16 %v953
    %v1157 = vunpack.c.l.b16 %v954
    %v1158 = vunpack.c.h.b16 %v954
    %v1159 = vpack.c.b16 %v1033, %v1031
    %v1160 = vpack.c.b16 %v1034, %v1032
    %v1161 = vpack.c.b16 %v1037, %v1035
    %v1162 = vpack.c.b16 %v1038, %v1036
    %v1163 = vpack.c.b16 %v1041, %v1039
    %v1164 = vpack.c.b16 %v1042, %v1040
    %v1165 = vpack.c.b16 %v1045, %v1043
    %v1166 = vpack.c.b16 %v1046, %v1044
    %v1167 = vpack.c.b16 %v1049, %v1047
    %v1168 = vpack.c.b16 %v1050, %v1048
    %v1169 = vpack.c.b16 %v1053, %v1051
    %v1170 = vpack.c.b16 %v1054, %v1052
    %v1171 = vpack.c.b16 %v1057, %v1055
    %v1172 = vpack.c.b16 %v1058, %v1056
    %v1173 = vpack.c.b16 %v1061, %v1059
    %v1174 = vpack.c.b16 %v1062, %v1060
    %v1175 = vpack.c.b16 %v1065, %v1063
    %v1176 = vpack.c.b16 %v1066, %v1064
    %v1177 = vpack.c.b16 %v1069, %v1067
    %v1178 = vpack.c.b16 %v1070, %v1068
    %v1179 = vpack.c.b16 %v1073, %v1071
    %v1180 = vpack.c.b16 %v1074, %v1072
    %v1181 = vpack.c.b16 %v1077, %v1075
    %v1182 = vpack.c.b16 %v1078, %v1076
    %v1183 = vpack.c.b16 %v1081, %v1079
    %v1184 = vpack.c.b16 %v1082, %v1080
    %v1185 = vpack.c.b16 %v1085, %v1083
    %v1186 = vpack.c.b16 %v1086, %v1084
    %v1187 = vpack.c.b16 %v1089, %v1087
    %v1188 = vpack.c.b16 %v1090, %v1088
    %v1189 = vpack.c.b16 %v1093, %v1091
    %v1190 = vpack.c.b16 %v1094, %v1092
    %v1191 = vpack.c.b16 %v1097, %v1095
    %v1192 = vpack.c.b16 %v1098, %v1096
    %v1193 = vpack.c.b16 %v1101, %v1099
    %v1194 = vpack.c.b16 %v1102, %v1100
    %v1195 = vpack.c.b16 %v1105, %v1103
    %v1196 = vpack.c.b16 %v1106, %v1104
    %v1197 = vpack.c.b16 %v1109, %v1107
    %v1198 = vpack.c.b16 %v1110, %v1108
    %v1199 = vpack.c.b16 %v1113, %v1111
    %v1200 = vpack.c.b16 %v1114, %v1112
    %v1201 = vpack.c.b16 %v1117, %v1115
    %v1202 = vpack.c.b16 %v1118, %v1116
    %v1203 = vpack.c.b16 %v1121, %v1119
    %v1204 = vpack.c.b16 %v1122, %v1120
    %v1205 = vpack.c.b16 %v1125, %v1123
    %v1206 = vpack.c.b16 %v1126, %v1124
    %v1207 = vpack.c.b16 %v1129, %v1127
    %v1208 = vpack.c.b16 %v1130, %v1128
    %v1209 = vpack.c.b16 %v1133, %v1131
    %v1210 = vpack.c.b16 %v1134, %v1132
    %v1211 = vpack.c.b16 %v1137, %v1135
    %v1212 = vpack.c.b16 %v1138, %v1136
    %v1213 = vpack.c.b16 %v1141, %v1139
    %v1214 = vpack.c.b16 %v1142, %v1140
    %v1215 = vpack.c.b16 %v1145, %v1143
    %v1216 = vpack.c.b16 %v1146, %v1144
    %v1217 = vpack.c.b16 %v1149, %v1147
    %v1218 = vpack.c.b16 %v1150, %v1148
    %v1219 = vpack.c.b16 %v1153, %v1151
    %v1220 = vpack.c.b16 %v1154, %v1152
    %v1221 = vpack.c.b16 %v1157, %v1155
    %v1222 = vpack.c.b16 %v1158, %v1156
    %1287 = vmatprep.subr.bf16.mxu0 %v1174
    %1288 = vmatpush1.bf16.msra.mxu0 %v1173
    %1289 = vmatprep.subr.bf16.mxu0 %v1172
    %1290 = vmatpush1.bf16.msra.mxu0 %v1171
    %1291 = vmatprep.subr.bf16.mxu0 %v1170
    %1292 = vmatpush1.bf16.msra.mxu0 %v1169
    %1293 = vmatprep.subr.bf16.mxu0 %v1168
    %1294 = vmatpush1.bf16.msra.mxu0 %v1167
    %1295 = vmatprep.subr.bf16.mxu0 %v1166
    %1296 = vmatpush1.bf16.msra.mxu0 %v1165
    %1297 = vmatprep.subr.bf16.mxu0 %v1164
    %1298 = vmatpush1.bf16.msra.mxu0 %v1163
    %1299 = vmatprep.subr.bf16.mxu0 %v1162
    %1300 = vmatpush1.bf16.msra.mxu0 %v1161
    %1301 = vmatprep.subr.bf16.mxu0 %v1160
    %1302 = vmatpush1.bf16.msra.mxu0 %v1159
    %1303 = vmatprep.subr.bf16.mxu0 %v1190
    %1304 = vmatpush2.bf16.msra.mxu0 %v1189
    %1305 = vmatprep.subr.bf16.mxu0 %v1188
    %1306 = vmatpush2.bf16.msra.mxu0 %v1187
    %1307 = vmatprep.subr.bf16.mxu0 %v1186
    %1308 = vmatpush2.bf16.msra.mxu0 %v1185
    %1309 = vmatprep.subr.bf16.mxu0 %v1184
    %1310 = vmatpush2.bf16.msra.mxu0 %v1183
    %1311 = vmatprep.subr.bf16.mxu0 %v1182
    %1312 = vmatpush2.bf16.msra.mxu0 %v1181
    %1313 = vmatprep.subr.bf16.mxu0 %v1180
    %1314 = vmatpush2.bf16.msra.mxu0 %v1179
    %1315 = vmatprep.subr.bf16.mxu0 %v1178
    %1316 = vmatpush2.bf16.msra.mxu0 %v1177
    %1317 = vmatprep.subr.bf16.mxu0 %v1176
    %1318 = vmatpush2.bf16.msra.mxu0 %v1175
    %1319 = vmatprep.mubr.bf16.mxu0 %v888
    %1320 = vmatmul.mubr.bf16.gmra.mxu0 %v887
    %v1321 = vpop.f32.mrf.mxu0
    %v1322 = vadd.f32 %v960, %v1321
    %v1323 = vpop.f32.mrf.mxu0
    %v1324 = vadd.f32 %v964, %v1323
    %v1325 = vpop.f32.mrf.mxu0
    %v1326 = vpop.f32.mrf.mxu0
    %1327 = vdwg.mxu0
    %1328 = vmatprep.subr.bf16.mxu0 %v1206
    %1329 = vmatpush1.bf16.msra.mxu0 %v1205
    %1330 = vmatprep.subr.bf16.mxu0 %v1204
    %1331 = vmatpush1.bf16.msra.mxu0 %v1203
    %1332 = vmatprep.subr.bf16.mxu0 %v1202
    %1333 = vmatpush1.bf16.msra.mxu0 %v1201
    %1334 = vmatprep.subr.bf16.mxu0 %v1200
    %1335 = vmatpush1.bf16.msra.mxu0 %v1199
    %1336 = vmatprep.subr.bf16.mxu0 %v1198
    %1337 = vmatpush1.bf16.msra.mxu0 %v1197
    %1338 = vmatprep.subr.bf16.mxu0 %v1196
    %1339 = vmatpush1.bf16.msra.mxu0 %v1195
    %1340 = vmatprep.subr.bf16.mxu0 %v1194
    %1341 = vmatpush1.bf16.msra.mxu0 %v1193
    %1342 = vmatprep.subr.bf16.mxu0 %v1192
    %1343 = vmatpush1.bf16.msra.mxu0 %v1191
    %1344 = vmatprep.subr.bf16.mxu0 %v1222
    %1345 = vmatpush2.bf16.msra.mxu0 %v1221
    %1346 = vmatprep.subr.bf16.mxu0 %v1220
    %1347 = vmatpush2.bf16.msra.mxu0 %v1219
    %1348 = vmatprep.subr.bf16.mxu0 %v1218
    %1349 = vmatpush2.bf16.msra.mxu0 %v1217
    %1350 = vmatprep.subr.bf16.mxu0 %v1216
    %1351 = vmatpush2.bf16.msra.mxu0 %v1215
    %1352 = vmatprep.subr.bf16.mxu0 %v1214
    %1353 = vmatpush2.bf16.msra.mxu0 %v1213
    %1354 = vmatprep.subr.bf16.mxu0 %v1212
    %1355 = vmatpush2.bf16.msra.mxu0 %v1211
    %1356 = vmatprep.subr.bf16.mxu0 %v1210
    %1357 = vmatpush2.bf16.msra.mxu0 %v1209
    %1358 = vmatprep.subr.bf16.mxu0 %v1208
    %1359 = vmatpush2.bf16.msra.mxu0 %v1207
    %1360 = vmatprep.mubr.bf16.mxu0 %v890
    %1361 = vmatmul.mubr.bf16.gmra.mxu0 %v889
    %v1362 = vpop.f32.mrf.mxu0
    %v1363 = vadd.f32 %v1322, %v1362
    %v1364 = vpop.f32.mrf.mxu0
    %v1365 = vadd.f32 %v1324, %v1364
    %v1366 = vpop.f32.mrf.mxu0
    %v1367 = vpop.f32.mrf.mxu0
    %1368 = vdwg.mxu0
    %v1369 = vmax.f32 %v1363, 0.0
    %v1370 = vmax.f32 %v1365, 0.0
    %v1371 = vpack.c.bf16 %v1369, %v1369
    %v1372 = vpack.c.bf16 %v1370, %v1370
    %v1373 = vld [vmem:[#allocation10] sm:$0xf]
    %v1374 = vld [vmem:[#allocation10 + $0x4] sm:$0xf]
    %v1375 = vld [vmem:[#allocation10 + $0x8] sm:$0xf]
    %v1376 = vld [vmem:[#allocation10 + $0xc] sm:$0xf]
    %v1377 = vld [vmem:[#allocation10 + $0x10] sm:$0xf]
    %v1378 = vld [vmem:[#allocation10 + $0x14] sm:$0xf]
    %v1379 = vld [vmem:[#allocation10 + $0x18] sm:$0xf]
    %v1380 = vld [vmem:[#allocation10 + $0x1c] sm:$0xf]
    %v1381 = vld [vmem:[#allocation10 + $0x20] sm:$0xf]
    %v1382 = vld [vmem:[#allocation10 + $0x24] sm:$0xf]
    %v1383 = vld [vmem:[#allocation10 + $0x28] sm:$0xf]
    %v1384 = vld [vmem:[#allocation10 + $0x2c] sm:$0xf]
    %v1385 = vld [vmem:[#allocation10 + $0x30] sm:$0xf]
    %v1386 = vld [vmem:[#allocation10 + $0x34] sm:$0xf]
    %v1387 = vld [vmem:[#allocation10 + $0x38] sm:$0xf]
    %v1388 = vld [vmem:[#allocation10 + $0x3c] sm:$0xf]
    %v1389 = vld [vmem:[#allocation10 + $0x40] sm:$0xf]
    %v1390 = vld [vmem:[#allocation10 + $0x44] sm:$0xf]
    %v1391 = vld [vmem:[#allocation10 + $0x48] sm:$0xf]
    %v1392 = vld [vmem:[#allocation10 + $0x4c] sm:$0xf]
    %v1393 = vld [vmem:[#allocation10 + $0x50] sm:$0xf]
    %v1394 = vld [vmem:[#allocation10 + $0x54] sm:$0xf]
    %v1395 = vld [vmem:[#allocation10 + $0x58] sm:$0xf]
    %v1396 = vld [vmem:[#allocation10 + $0x5c] sm:$0xf]
    %v1397 = vld [vmem:[#allocation10 + $0x60] sm:$0xf]
    %v1398 = vld [vmem:[#allocation10 + $0x64] sm:$0xf]
    %v1399 = vld [vmem:[#allocation10 + $0x68] sm:$0xf]
    %v1400 = vld [vmem:[#allocation10 + $0x6c] sm:$0xf]
    %v1401 = vld [vmem:[#allocation10 + $0x70] sm:$0xf]
    %v1402 = vld [vmem:[#allocation10 + $0x74] sm:$0xf]
    %v1403 = vld [vmem:[#allocation10 + $0x78] sm:$0xf]
    %v1404 = vld [vmem:[#allocation10 + $0x7c] sm:$0xf]
    %v1405 = vld [vmem:[%s10] sm:$0x1]
    %v1407 = vlaneseq
    %v1408 = vshrl.u32 %v1407, 7
    %v1409 = vsub.s32 0, %v1408
    %v1410 = vrot.slane %v1405, %v1409
    %v1444 = vunpack.c.l.b16 %v1373
    %v1445 = vunpack.c.l.b16 %v1374
    %v1446 = vunpack.c.l.b16 %v1375
    %v1447 = vunpack.c.l.b16 %v1376
    %v1448 = vunpack.c.l.b16 %v1377
    %v1449 = vunpack.c.l.b16 %v1378
    %v1450 = vunpack.c.l.b16 %v1379
    %v1451 = vunpack.c.l.b16 %v1380
    %v1452 = vunpack.c.l.b16 %v1381
    %v1453 = vunpack.c.l.b16 %v1382
    %v1454 = vunpack.c.l.b16 %v1383
    %v1455 = vunpack.c.l.b16 %v1384
    %v1456 = vunpack.c.l.b16 %v1385
    %v1457 = vunpack.c.l.b16 %v1386
    %v1458 = vunpack.c.l.b16 %v1387
    %v1459 = vunpack.c.l.b16 %v1388
    %v1460 = vunpack.c.l.b16 %v1389
    %v1461 = vunpack.c.l.b16 %v1390
    %v1462 = vunpack.c.l.b16 %v1391
    %v1463 = vunpack.c.l.b16 %v1392
    %v1464 = vunpack.c.l.b16 %v1393
    %v1465 = vunpack.c.l.b16 %v1394
    %v1466 = vunpack.c.l.b16 %v1395
    %v1467 = vunpack.c.l.b16 %v1396
    %v1468 = vunpack.c.l.b16 %v1397
    %v1469 = vunpack.c.l.b16 %v1398
    %v1470 = vunpack.c.l.b16 %v1399
    %v1471 = vunpack.c.l.b16 %v1400
    %v1472 = vunpack.c.l.b16 %v1401
    %v1473 = vunpack.c.l.b16 %v1402
    %v1474 = vunpack.c.l.b16 %v1403
    %v1475 = vunpack.c.l.b16 %v1404
    %v1476 = vpack.c.b16 %v1445, %v1444
    %v1477 = vpack.c.b16 %v1447, %v1446
    %v1478 = vpack.c.b16 %v1449, %v1448
    %v1479 = vpack.c.b16 %v1451, %v1450
    %v1480 = vpack.c.b16 %v1453, %v1452
    %v1481 = vpack.c.b16 %v1455, %v1454
    %v1482 = vpack.c.b16 %v1457, %v1456
    %v1483 = vpack.c.b16 %v1459, %v1458
    %v1484 = vpack.c.b16 %v1461, %v1460
    %v1485 = vpack.c.b16 %v1463, %v1462
    %v1486 = vpack.c.b16 %v1465, %v1464
    %v1487 = vpack.c.b16 %v1467, %v1466
    %v1488 = vpack.c.b16 %v1469, %v1468
    %v1489 = vpack.c.b16 %v1471, %v1470
    %v1490 = vpack.c.b16 %v1473, %v1472
    %v1491 = vpack.c.b16 %v1475, %v1474
    %1508 = vmatprep.subr.bf16.mxu0 0
    %1509 = vmatpush1.bf16.msra.mxu0 %v1483
    %1510 = vmatprep.subr.bf16.mxu0 0
    %1511 = vmatpush1.bf16.msra.mxu0 %v1482
    %1512 = vmatprep.subr.bf16.mxu0 0
    %1513 = vmatpush1.bf16.msra.mxu0 %v1481
    %1514 = vmatprep.subr.bf16.mxu0 0
    %1515 = vmatpush1.bf16.msra.mxu0 %v1480
    %1516 = vmatprep.subr.bf16.mxu0 0
    %1517 = vmatpush1.bf16.msra.mxu0 %v1479
    %1518 = vmatprep.subr.bf16.mxu0 0
    %1519 = vmatpush1.bf16.msra.mxu0 %v1478
    %1520 = vmatprep.subr.bf16.mxu0 0
    %1521 = vmatpush1.bf16.msra.mxu0 %v1477
    %1522 = vmatprep.subr.bf16.mxu0 0
    %1523 = vmatpush1.bf16.msra.mxu0 %v1476
    %1524 = vmatprep.subr.bf16.mxu0 0
    %1525 = vmatpush2.bf16.msra.mxu0 %v1491
    %1526 = vmatprep.subr.bf16.mxu0 0
    %1527 = vmatpush2.bf16.msra.mxu0 %v1490
    %1528 = vmatprep.subr.bf16.mxu0 0
    %1529 = vmatpush2.bf16.msra.mxu0 %v1489
    %1530 = vmatprep.subr.bf16.mxu0 0
    %1531 = vmatpush2.bf16.msra.mxu0 %v1488
    %1532 = vmatprep.subr.bf16.mxu0 0
    %1533 = vmatpush2.bf16.msra.mxu0 %v1487
    %1534 = vmatprep.subr.bf16.mxu0 0
    %1535 = vmatpush2.bf16.msra.mxu0 %v1486
    %1536 = vmatprep.subr.bf16.mxu0 0
    %1537 = vmatpush2.bf16.msra.mxu0 %v1485
    %1538 = vmatprep.subr.bf16.mxu0 0
    %1539 = vmatpush2.bf16.msra.mxu0 %v1484
    %1540 = vmatprep.mubr.bf16.mxu0 %v1372
    %1541 = vmatmul.mubr.bf16.gmra.mxu0 %v1371
    %v1542 = vpop.f32.mrf.mxu0
    %v1543 = vadd.f32 %v1410, %v1542
    %v1544 = vpop.f32.mrf.mxu0
    %v1545 = vpop.f32.mrf.mxu0
    %v1546 = vpop.f32.mrf.mxu0
    %1547 = vdwg.mxu0
    %v1548 = vmax.f32 %v1543, 0.0
    %v1549 = vpack.c.bf16 %v1548, %v1548
    %v1550 = vld [vmem:[#allocation11] sm:$0xff]
    %v1551 = vld [vmem:[#allocation11 + $0x8] sm:$0xff]
    %v1552 = vld [vmem:[#allocation11 + $0x10] sm:$0xff]
    %v1553 = vld [vmem:[#allocation11 + $0x18] sm:$0xf]
    %v1554 = vld [vmem:[#allocation11 + $0x1c] sm:$0xff]
    %v1555 = vld [vmem:[#allocation11 + $0x24] sm:$0xff]
    %v1556 = vld [vmem:[#allocation11 + $0x2c] sm:$0xff]
    %v1557 = vld [vmem:[#allocation11 + $0x34] sm:$0xf]
    %v1558 = vld [vmem:[#allocation11 + $0x38] sm:$0xff]
    %v1559 = vld [vmem:[#allocation11 + $0x40] sm:$0xff]
    %v1560 = vld [vmem:[#allocation11 + $0x48] sm:$0xff]
    %v1561 = vld [vmem:[#allocation11 + $0x50] sm:$0xf]
    %v1562 = vld [vmem:[#allocation11 + $0x54] sm:$0xff]
    %v1563 = vld [vmem:[#allocation11 + $0x5c] sm:$0xff]
    %v1564 = vld [vmem:[#allocation11 + $0x64] sm:$0xff]
    %v1565 = vld [vmem:[#allocation11 + $0x6c] sm:$0xf]
    %v1566 = vld [vmem:[#allocation11 + $0x70] sm:$0xff]
    %v1567 = vld [vmem:[#allocation11 + $0x78] sm:$0xff]
    %v1568 = vld [vmem:[#allocation11 + $0x80] sm:$0xff]
    %v1569 = vld [vmem:[#allocation11 + $0x88] sm:$0xf]
    %v1570 = vld [vmem:[#allocation11 + $0x8c] sm:$0xff]
    %v1571 = vld [vmem:[#allocation11 + $0x94] sm:$0xff]
    %v1572 = vld [vmem:[#allocation11 + $0x9c] sm:$0xff]
    %v1573 = vld [vmem:[#allocation11 + $0xa4] sm:$0xf]
    %v1574 = vld [vmem:[#allocation11 + $0xa8] sm:$0xff]
    %v1575 = vld [vmem:[#allocation11 + $0xb0] sm:$0xff]
    %v1576 = vld [vmem:[#allocation11 + $0xb8] sm:$0xff]
    %v1577 = vld [vmem:[#allocation11 + $0xc0] sm:$0xf]
    %v1578 = vld [vmem:[#allocation11 + $0xc4] sm:$0xff]
    %v1579 = vld [vmem:[#allocation11 + $0xcc] sm:$0xff]
    %v1580 = vld [vmem:[#allocation11 + $0xd4] sm:$0xff]
    %v1581 = vld [vmem:[#allocation11 + $0xdc] sm:$0xf]
    %v1582 = vld [vmem:[#allocation11 + $0xe0] sm:$0xff]
    %v1583 = vld [vmem:[#allocation11 + $0xe8] sm:$0xff]
    %v1584 = vld [vmem:[#allocation11 + $0xf0] sm:$0xff]
    %v1585 = vld [vmem:[#allocation11 + $0xf8] sm:$0xf]
    %v1586 = vld [vmem:[#allocation11 + $0xfc] sm:$0xff]
    %v1587 = vld [vmem:[#allocation11 + $0x104] sm:$0xff]
    %v1588 = vld [vmem:[#allocation11 + $0x10c] sm:$0xff]
    %v1589 = vld [vmem:[#allocation11 + $0x114] sm:$0xf]
    %v1590 = vld [vmem:[#allocation11 + $0x118] sm:$0xff]
    %v1591 = vld [vmem:[#allocation11 + $0x120] sm:$0xff]
    %v1592 = vld [vmem:[#allocation11 + $0x128] sm:$0xff]
    %v1593 = vld [vmem:[#allocation11 + $0x130] sm:$0xf]
    %v1594 = vld [vmem:[#allocation11 + $0x134] sm:$0xff]
    %v1595 = vld [vmem:[#allocation11 + $0x13c] sm:$0xff]
    %v1596 = vld [vmem:[#allocation11 + $0x144] sm:$0xff]
    %v1597 = vld [vmem:[#allocation11 + $0x14c] sm:$0xf]
    %v1598 = vld [vmem:[#allocation11 + $0x150] sm:$0xff]
    %v1599 = vld [vmem:[#allocation11 + $0x158] sm:$0xff]
    %v1600 = vld [vmem:[#allocation11 + $0x160] sm:$0xff]
    %v1601 = vld [vmem:[#allocation11 + $0x168] sm:$0xf]
    %v1602 = vld [vmem:[#allocation11 + $0x16c] sm:$0xff]
    %v1603 = vld [vmem:[#allocation11 + $0x174] sm:$0xff]
    %v1604 = vld [vmem:[#allocation11 + $0x17c] sm:$0xff]
    %v1605 = vld [vmem:[#allocation11 + $0x184] sm:$0xf]
    %v1606 = vld [vmem:[#allocation11 + $0x188] sm:$0xff]
    %v1607 = vld [vmem:[#allocation11 + $0x190] sm:$0xff]
    %v1608 = vld [vmem:[#allocation11 + $0x198] sm:$0xff]
    %v1609 = vld [vmem:[#allocation11 + $0x1a0] sm:$0xf]
    %v1610 = vld [vmem:[#allocation11 + $0x1a4] sm:$0xff]
    %v1611 = vld [vmem:[#allocation11 + $0x1ac] sm:$0xff]
    %v1612 = vld [vmem:[#allocation11 + $0x1b4] sm:$0xff]
    %v1613 = vld [vmem:[#allocation11 + $0x1bc] sm:$0xf]
    %v1614 = vld [vmem:[%s12] sm:$0xff]
    %v1616 = vlaneseq
    %v1617 = vshrl.u32 %v1616, 7
    %v1618 = vsub.s32 0, %v1617
    %v1619 = vrot.slane %v1614, %v1618
    %v1620 = vlaneseq
    %v1621 = vshrl.u32 %v1620, 7
    %v1622 = vsub.s32 1, %v1621
    %v1623 = vrot.slane %v1614, %v1622
    %v1624 = vlaneseq
    %v1625 = vshrl.u32 %v1624, 7
    %v1626 = vsub.s32 2, %v1625
    %v1627 = vrot.slane %v1614, %v1626
    %v1628 = vlaneseq
    %v1629 = vshrl.u32 %v1628, 7
    %v1630 = vsub.s32 3, %v1629
    %v1631 = vrot.slane %v1614, %v1630
    %v1632 = vlaneseq
    %v1633 = vshrl.u32 %v1632, 7
    %v1634 = vsub.s32 4, %v1633
    %v1635 = vrot.slane %v1614, %v1634
    %v1636 = vlaneseq
    %v1637 = vshrl.u32 %v1636, 7
    %v1638 = vsub.s32 5, %v1637
    %v1639 = vrot.slane %v1614, %v1638
    %v1640 = vlaneseq
    %v1641 = vshrl.u32 %v1640, 7
    %v1642 = vsub.s32 6, %v1641
    %v1643 = vrot.slane %v1614, %v1642
    %v1715 = vunpack.c.l.b16 %v1550
    %v1716 = vunpack.c.h.b16 %v1550
    %v1717 = vunpack.c.l.b16 %v1551
    %v1718 = vunpack.c.h.b16 %v1551
    %v1719 = vunpack.c.l.b16 %v1552
    %v1720 = vunpack.c.h.b16 %v1552
    %v1721 = vunpack.c.l.b16 %v1553
    %v1722 = vunpack.c.l.b16 %v1554
    %v1723 = vunpack.c.h.b16 %v1554
    %v1724 = vunpack.c.l.b16 %v1555
    %v1725 = vunpack.c.h.b16 %v1555
    %v1726 = vunpack.c.l.b16 %v1556
    %v1727 = vunpack.c.h.b16 %v1556
    %v1728 = vunpack.c.l.b16 %v1557
    %v1729 = vunpack.c.l.b16 %v1558
    %v1730 = vunpack.c.h.b16 %v1558
    %v1731 = vunpack.c.l.b16 %v1559
    %v1732 = vunpack.c.h.b16 %v1559
    %v1733 = vunpack.c.l.b16 %v1560
    %v1734 = vunpack.c.h.b16 %v1560
    %v1735 = vunpack.c.l.b16 %v1561
    %v1736 = vunpack.c.l.b16 %v1562
    %v1737 = vunpack.c.h.b16 %v1562
    %v1738 = vunpack.c.l.b16 %v1563
    %v1739 = vunpack.c.h.b16 %v1563
    %v1740 = vunpack.c.l.b16 %v1564
    %v1741 = vunpack.c.h.b16 %v1564
    %v1742 = vunpack.c.l.b16 %v1565
    %v1743 = vunpack.c.l.b16 %v1566
    %v1744 = vunpack.c.h.b16 %v1566
    %v1745 = vunpack.c.l.b16 %v1567
    %v1746 = vunpack.c.h.b16 %v1567
    %v1747 = vunpack.c.l.b16 %v1568
    %v1748 = vunpack.c.h.b16 %v1568
    %v1749 = vunpack.c.l.b16 %v1569
    %v1750 = vunpack.c.l.b16 %v1570
    %v1751 = vunpack.c.h.b16 %v1570
    %v1752 = vunpack.c.l.b16 %v1571
    %v1753 = vunpack.c.h.b16 %v1571
    %v1754 = vunpack.c.l.b16 %v1572
    %v1755 = vunpack.c.h.b16 %v1572
    %v1756 = vunpack.c.l.b16 %v1573
    %v1757 = vunpack.c.l.b16 %v1574
    %v1758 = vunpack.c.h.b16 %v1574
    %v1759 = vunpack.c.l.b16 %v1575
    %v1760 = vunpack.c.h.b16 %v1575
    %v1761 = vunpack.c.l.b16 %v1576
    %v1762 = vunpack.c.h.b16 %v1576
    %v1763 = vunpack.c.l.b16 %v1577
    %v1764 = vunpack.c.l.b16 %v1578
    %v1765 = vunpack.c.h.b16 %v1578
    %v1766 = vunpack.c.l.b16 %v1579
    %v1767 = vunpack.c.h.b16 %v1579
    %v1768 = vunpack.c.l.b16 %v1580
    %v1769 = vunpack.c.h.b16 %v1580
    %v1770 = vunpack.c.l.b16 %v1581
    %v1771 = vunpack.c.l.b16 %v1582
    %v1772 = vunpack.c.h.b16 %v1582
    %v1773 = vunpack.c.l.b16 %v1583
    %v1774 = vunpack.c.h.b16 %v1583
    %v1775 = vunpack.c.l.b16 %v1584
    %v1776 = vunpack.c.h.b16 %v1584
    %v1777 = vunpack.c.l.b16 %v1585
    %v1778 = vunpack.c.l.b16 %v1586
    %v1779 = vunpack.c.h.b16 %v1586
    %v1780 = vunpack.c.l.b16 %v1587
    %v1781 = vunpack.c.h.b16 %v1587
    %v1782 = vunpack.c.l.b16 %v1588
    %v1783 = vunpack.c.h.b16 %v1588
    %v1784 = vunpack.c.l.b16 %v1589
    %v1785 = vunpack.c.l.b16 %v1590
    %v1786 = vunpack.c.h.b16 %v1590
    %v1787 = vunpack.c.l.b16 %v1591
    %v1788 = vunpack.c.h.b16 %v1591
    %v1789 = vunpack.c.l.b16 %v1592
    %v1790 = vunpack.c.h.b16 %v1592
    %v1791 = vunpack.c.l.b16 %v1593
    %v1792 = vunpack.c.l.b16 %v1594
    %v1793 = vunpack.c.h.b16 %v1594
    %v1794 = vunpack.c.l.b16 %v1595
    %v1795 = vunpack.c.h.b16 %v1595
    %v1796 = vunpack.c.l.b16 %v1596
    %v1797 = vunpack.c.h.b16 %v1596
    %v1798 = vunpack.c.l.b16 %v1597
    %v1799 = vunpack.c.l.b16 %v1598
    %v1800 = vunpack.c.h.b16 %v1598
    %v1801 = vunpack.c.l.b16 %v1599
    %v1802 = vunpack.c.h.b16 %v1599
    %v1803 = vunpack.c.l.b16 %v1600
    %v1804 = vunpack.c.h.b16 %v1600
    %v1805 = vunpack.c.l.b16 %v1601
    %v1806 = vunpack.c.l.b16 %v1602
    %v1807 = vunpack.c.h.b16 %v1602
    %v1808 = vunpack.c.l.b16 %v1603
    %v1809 = vunpack.c.h.b16 %v1603
    %v1810 = vunpack.c.l.b16 %v1604
    %v1811 = vunpack.c.h.b16 %v1604
    %v1812 = vunpack.c.l.b16 %v1605
    %v1813 = vunpack.c.l.b16 %v1606
    %v1814 = vunpack.c.h.b16 %v1606
    %v1815 = vunpack.c.l.b16 %v1607
    %v1816 = vunpack.c.h.b16 %v1607
    %v1817 = vunpack.c.l.b16 %v1608
    %v1818 = vunpack.c.h.b16 %v1608
    %v1819 = vunpack.c.l.b16 %v1609
    %v1820 = vunpack.c.l.b16 %v1610
    %v1821 = vunpack.c.h.b16 %v1610
    %v1822 = vunpack.c.l.b16 %v1611
    %v1823 = vunpack.c.h.b16 %v1611
    %v1824 = vunpack.c.l.b16 %v1612
    %v1825 = vunpack.c.h.b16 %v1612
    %v1826 = vunpack.c.l.b16 %v1613
    %v1827 = vpack.c.b16 %v1722, %v1715
    %v1828 = vpack.c.b16 %v1723, %v1716
    %v1829 = vpack.c.b16 %v1724, %v1717
    %v1830 = vpack.c.b16 %v1725, %v1718
    %v1831 = vpack.c.b16 %v1726, %v1719
    %v1832 = vpack.c.b16 %v1727, %v1720
    %v1833 = vpack.c.b16 %v1728, %v1721
    %v1834 = vpack.c.b16 %v1736, %v1729
    %v1835 = vpack.c.b16 %v1737, %v1730
    %v1836 = vpack.c.b16 %v1738, %v1731
    %v1837 = vpack.c.b16 %v1739, %v1732
    %v1838 = vpack.c.b16 %v1740, %v1733
    %v1839 = vpack.c.b16 %v1741, %v1734
    %v1840 = vpack.c.b16 %v1742, %v1735
    %v1841 = vpack.c.b16 %v1750, %v1743
    %v1842 = vpack.c.b16 %v1751, %v1744
    %v1843 = vpack.c.b16 %v1752, %v1745
    %v1844 = vpack.c.b16 %v1753, %v1746
    %v1845 = vpack.c.b16 %v1754, %v1747
    %v1846 = vpack.c.b16 %v1755, %v1748
    %v1847 = vpack.c.b16 %v1756, %v1749
    %v1848 = vpack.c.b16 %v1764, %v1757
    %v1849 = vpack.c.b16 %v1765, %v1758
    %v1850 = vpack.c.b16 %v1766, %v1759
    %v1851 = vpack.c.b16 %v1767, %v1760
    %v1852 = vpack.c.b16 %v1768, %v1761
    %v1853 = vpack.c.b16 %v1769, %v1762
    %v1854 = vpack.c.b16 %v1770, %v1763
    %v1855 = vpack.c.b16 %v1778, %v1771
    %v1856 = vpack.c.b16 %v1779, %v1772
    %v1857 = vpack.c.b16 %v1780, %v1773
    %v1858 = vpack.c.b16 %v1781, %v1774
    %v1859 = vpack.c.b16 %v1782, %v1775
    %v1860 = vpack.c.b16 %v1783, %v1776
    %v1861 = vpack.c.b16 %v1784, %v1777
    %v1862 = vpack.c.b16 %v1792, %v1785
    %v1863 = vpack.c.b16 %v1793, %v1786
    %v1864 = vpack.c.b16 %v1794, %v1787
    %v1865 = vpack.c.b16 %v1795, %v1788
    %v1866 = vpack.c.b16 %v1796, %v1789
    %v1867 = vpack.c.b16 %v1797, %v1790
    %v1868 = vpack.c.b16 %v1798, %v1791
    %v1869 = vpack.c.b16 %v1806, %v1799
    %v1870 = vpack.c.b16 %v1807, %v1800
    %v1871 = vpack.c.b16 %v1808, %v1801
    %v1872 = vpack.c.b16 %v1809, %v1802
    %v1873 = vpack.c.b16 %v1810, %v1803
    %v1874 = vpack.c.b16 %v1811, %v1804
    %v1875 = vpack.c.b16 %v1812, %v1805
    %v1876 = vpack.c.b16 %v1820, %v1813
    %v1877 = vpack.c.b16 %v1821, %v1814
    %v1878 = vpack.c.b16 %v1822, %v1815
    %v1879 = vpack.c.b16 %v1823, %v1816
    %v1880 = vpack.c.b16 %v1824, %v1817
    %v1881 = vpack.c.b16 %v1825, %v1818
    %v1882 = vpack.c.b16 %v1826, %v1819
    %1939 = vmatprep.subr.bf16.mxu0 %v1877
    %1940 = vmatpush1.bf16.msra.mxu0 %v1876
    %1941 = vmatprep.subr.bf16.mxu0 %v1870
    %1942 = vmatpush1.bf16.msra.mxu0 %v1869
    %1943 = vmatprep.subr.bf16.mxu0 %v1863
    %1944 = vmatpush1.bf16.msra.mxu0 %v1862
    %1945 = vmatprep.subr.bf16.mxu0 %v1856
    %1946 = vmatpush1.bf16.msra.mxu0 %v1855
    %1947 = vmatprep.subr.bf16.mxu0 %v1849
    %1948 = vmatpush1.bf16.msra.mxu0 %v1848
    %1949 = vmatprep.subr.bf16.mxu0 %v1842
    %1950 = vmatpush1.bf16.msra.mxu0 %v1841
    %1951 = vmatprep.subr.bf16.mxu0 %v1835
    %1952 = vmatpush1.bf16.msra.mxu0 %v1834
    %1953 = vmatprep.subr.bf16.mxu0 %v1828
    %1954 = vmatpush1.bf16.msra.mxu0 %v1827
    %1955 = vmatprep.subr.bf16.mxu0 0
    %1956 = vmatpush2.bf16.msra.mxu0 0
    %1957 = vmatprep.subr.bf16.mxu0 0
    %1958 = vmatpush2.bf16.msra.mxu0 0
    %1959 = vmatprep.subr.bf16.mxu0 0
    %1960 = vmatpush2.bf16.msra.mxu0 0
    %1961 = vmatprep.subr.bf16.mxu0 0
    %1962 = vmatpush2.bf16.msra.mxu0 0
    %1963 = vmatprep.subr.bf16.mxu0 0
    %1964 = vmatpush2.bf16.msra.mxu0 0
    %1965 = vmatprep.subr.bf16.mxu0 0
    %1966 = vmatpush2.bf16.msra.mxu0 0
    %1967 = vmatprep.subr.bf16.mxu0 0
    %1968 = vmatpush2.bf16.msra.mxu0 0
    %1969 = vmatprep.subr.bf16.mxu0 0
    %1970 = vmatpush2.bf16.msra.mxu0 0
    %1971 = vmatprep.mubr.bf16.mxu0 0
    %1972 = vmatmul.mubr.bf16.gmra.mxu0 %v1549
    %v1973 = vpop.f32.mrf.mxu0
    %v1974 = vadd.f32 %v1619, %v1973
    %v1975 = vpop.f32.mrf.mxu0
    %v1976 = vadd.f32 %v1623, %v1975
    %v1977 = vpop.f32.mrf.mxu0
    %v1978 = vpop.f32.mrf.mxu0
    %1979 = vdwg.mxu0
    %1980 = vmatprep.subr.bf16.mxu0 %v1879
    %1981 = vmatpush1.bf16.msra.mxu0 %v1878
    %1982 = vmatprep.subr.bf16.mxu0 %v1872
    %1983 = vmatpush1.bf16.msra.mxu0 %v1871
    %1984 = vmatprep.subr.bf16.mxu0 %v1865
    %1985 = vmatpush1.bf16.msra.mxu0 %v1864
    %1986 = vmatprep.subr.bf16.mxu0 %v1858
    %1987 = vmatpush1.bf16.msra.mxu0 %v1857
    %1988 = vmatprep.subr.bf16.mxu0 %v1851
    %1989 = vmatpush1.bf16.msra.mxu0 %v1850
    %1990 = vmatprep.subr.bf16.mxu0 %v1844
    %1991 = vmatpush1.bf16.msra.mxu0 %v1843
    %1992 = vmatprep.subr.bf16.mxu0 %v1837
    %1993 = vmatpush1.bf16.msra.mxu0 %v1836
    %1994 = vmatprep.subr.bf16.mxu0 %v1830
    %1995 = vmatpush1.bf16.msra.mxu0 %v1829
    %1996 = vmatprep.subr.bf16.mxu0 0
    %1997 = vmatpush2.bf16.msra.mxu0 0
    %1998 = vmatprep.subr.bf16.mxu0 0
    %1999 = vmatpush2.bf16.msra.mxu0 0
    %2000 = vmatprep.subr.bf16.mxu0 0
    %2001 = vmatpush2.bf16.msra.mxu0 0
    %2002 = vmatprep.subr.bf16.mxu0 0
    %2003 = vmatpush2.bf16.msra.mxu0 0
    %2004 = vmatprep.subr.bf16.mxu0 0
    %2005 = vmatpush2.bf16.msra.mxu0 0
    %2006 = vmatprep.subr.bf16.mxu0 0
    %2007 = vmatpush2.bf16.msra.mxu0 0
    %2008 = vmatprep.subr.bf16.mxu0 0
    %2009 = vmatpush2.bf16.msra.mxu0 0
    %2010 = vmatprep.subr.bf16.mxu0 0
    %2011 = vmatpush2.bf16.msra.mxu0 0
    %2012 = vmatprep.mubr.bf16.mxu0 0
    %2013 = vmatmul.mubr.bf16.gmra.mxu0 %v1549
    %v2014 = vpop.f32.mrf.mxu0
    %v2015 = vadd.f32 %v1627, %v2014
    %v2016 = vpop.f32.mrf.mxu0
    %v2017 = vadd.f32 %v1631, %v2016
    %v2018 = vpop.f32.mrf.mxu0
    %v2019 = vpop.f32.mrf.mxu0
    %2020 = vdwg.mxu0
    %2021 = vmatprep.subr.bf16.mxu0 %v1881
    %2022 = vmatpush1.bf16.msra.mxu0 %v1880
    %2023 = vmatprep.subr.bf16.mxu0 %v1874
    %2024 = vmatpush1.bf16.msra.mxu0 %v1873
    %2025 = vmatprep.subr.bf16.mxu0 %v1867
    %2026 = vmatpush1.bf16.msra.mxu0 %v1866
    %2027 = vmatprep.subr.bf16.mxu0 %v1860
    %2028 = vmatpush1.bf16.msra.mxu0 %v1859
    %2029 = vmatprep.subr.bf16.mxu0 %v1853
    %2030 = vmatpush1.bf16.msra.mxu0 %v1852
    %2031 = vmatprep.subr.bf16.mxu0 %v1846
    %2032 = vmatpush1.bf16.msra.mxu0 %v1845
    %2033 = vmatprep.subr.bf16.mxu0 %v1839
    %2034 = vmatpush1.bf16.msra.mxu0 %v1838
    %2035 = vmatprep.subr.bf16.mxu0 %v1832
    %2036 = vmatpush1.bf16.msra.mxu0 %v1831
    %2037 = vmatprep.subr.bf16.mxu0 0
    %2038 = vmatpush2.bf16.msra.mxu0 0
    %2039 = vmatprep.subr.bf16.mxu0 0
    %2040 = vmatpush2.bf16.msra.mxu0 0
    %2041 = vmatprep.subr.bf16.mxu0 0
    %2042 = vmatpush2.bf16.msra.mxu0 0
    %2043 = vmatprep.subr.bf16.mxu0 0
    %2044 = vmatpush2.bf16.msra.mxu0 0
    %2045 = vmatprep.subr.bf16.mxu0 0
    %2046 = vmatpush2.bf16.msra.mxu0 0
    %2047 = vmatprep.subr.bf16.mxu0 0
    %2048 = vmatpush2.bf16.msra.mxu0 0
    %2049 = vmatprep.subr.bf16.mxu0 0
    %2050 = vmatpush2.bf16.msra.mxu0 0
    %2051 = vmatprep.subr.bf16.mxu0 0
    %2052 = vmatpush2.bf16.msra.mxu0 0
    %2053 = vmatprep.mubr.bf16.mxu0 0
    %2054 = vmatmul.mubr.bf16.gmra.mxu0 %v1549
    %v2055 = vpop.f32.mrf.mxu0
    %v2056 = vadd.f32 %v1635, %v2055
    %v2057 = vpop.f32.mrf.mxu0
    %v2058 = vadd.f32 %v1639, %v2057
    %v2059 = vpop.f32.mrf.mxu0
    %v2060 = vpop.f32.mrf.mxu0
    %2061 = vdwg.mxu0
    %2062 = vmatprep.subr.bf16.mxu0 0
    %2063 = vmatpush1.bf16.msra.mxu0 %v1882
    %2064 = vmatprep.subr.bf16.mxu0 0
    %2065 = vmatpush1.bf16.msra.mxu0 %v1875
    %2066 = vmatprep.subr.bf16.mxu0 0
    %2067 = vmatpush1.bf16.msra.mxu0 %v1868
    %2068 = vmatprep.subr.bf16.mxu0 0
    %2069 = vmatpush1.bf16.msra.mxu0 %v1861
    %2070 = vmatprep.subr.bf16.mxu0 0
    %2071 = vmatpush1.bf16.msra.mxu0 %v1854
    %2072 = vmatprep.subr.bf16.mxu0 0
    %2073 = vmatpush1.bf16.msra.mxu0 %v1847
    %2074 = vmatprep.subr.bf16.mxu0 0
    %2075 = vmatpush1.bf16.msra.mxu0 %v1840
    %2076 = vmatprep.subr.bf16.mxu0 0
    %2077 = vmatpush1.bf16.msra.mxu0 %v1833
    %2078 = vmatprep.subr.bf16.mxu0 0
    %2079 = vmatpush2.bf16.msra.mxu0 0
    %2080 = vmatprep.subr.bf16.mxu0 0
    %2081 = vmatpush2.bf16.msra.mxu0 0
    %2082 = vmatprep.subr.bf16.mxu0 0
    %2083 = vmatpush2.bf16.msra.mxu0 0
    %2084 = vmatprep.subr.bf16.mxu0 0
    %2085 = vmatpush2.bf16.msra.mxu0 0
    %2086 = vmatprep.subr.bf16.mxu0 0
    %2087 = vmatpush2.bf16.msra.mxu0 0
    %2088 = vmatprep.subr.bf16.mxu0 0
    %2089 = vmatpush2.bf16.msra.mxu0 0
    %2090 = vmatprep.subr.bf16.mxu0 0
    %2091 = vmatpush2.bf16.msra.mxu0 0
    %2092 = vmatprep.subr.bf16.mxu0 0
    %2093 = vmatpush2.bf16.msra.mxu0 0
    %2094 = vmatprep.mubr.bf16.mxu0 0
    %2095 = vmatmul.mubr.bf16.gmra.mxu0 %v1549
    %v2096 = vpop.f32.mrf.mxu0
    %v2097 = vadd.f32 %v1643, %v2096
    %v2098 = vpop.f32.mrf.mxu0
    %v2099 = vpop.f32.mrf.mxu0
    %v2100 = vpop.f32.mrf.mxu0
    %2101 = vdwg.mxu0
    %2102 = vst [vmem:[#allocation13] sm:$0xff] %v1974
    %2103 = vst [vmem:[#allocation13 + $0x8] sm:$0xff] %v1976
    %2104 = vst [vmem:[#allocation13 + $0x10] sm:$0xff] %v2015
    %2105 = vst [vmem:[#allocation13 + $0x18] sm:$0xff] %v2017
    %2106 = vst [vmem:[#allocation13 + $0x20] sm:$0xff] %v2056
    %2107 = vst [vmem:[#allocation13 + $0x28] sm:$0xff] %v2058
    %2108 = vst [vmem:[#allocation13 + $0x30] sm:$0xff] %v2097
    // Predicated region
    $region78: #{decoder_net_forward.1} parent=1 // pred_check
      _
    $region79: #{decoder_net_forward.1} parent=1 // pred_check_branch
      %2110 = sbr.rel (0) target = $region81
    $region80: #{decoder_net_forward.1} parent=1 // pred_region
      %s2112 = ssub.s32 896, 896
      %2113 = vsyncadd [#allocation4], %s2112
      %s2115 = sshll.u32 [#allocation13], 4
      %s2116 = int_to_ptr.vmem [resolvable:$true] %s2115
      %2118 = dma.vmem_to_hbm [thread:$0]  %s2116, 896, %s13, [#allocation4]
    $region81: #{decoder_net_forward.1} parent=1 // pred_fallthru
      _
    // Predicated region
    $region82: #{decoder_net_forward.1} parent=1 // pred_check
      _
    $region83: #{decoder_net_forward.1} parent=1 // pred_check_branch
      %2120 = sbr.rel (0) target = $region85
    $region84: #{decoder_net_forward.1} parent=1 // pred_region
      %2121 = dma.done [#allocation4], 896
    $region85: #{decoder_net_forward.1} parent=1 // pred_fallthru
      _
    %2122 = vsyncpa [#allocation3], 1
    %2123 = vsyncpa [#allocation6], 1
    %2124 = vsyncpa [#allocation9], 1
    %2125 = vsyncpa [#allocation12], 1
    %2126 = vsyncpa [#allocation4], 1

</llo_original>
